<compile_context>
chip_gen: v6e
topology: v6e:2x2x1
jax: 0.10.0
libtpu: 0.0.40
codegen_flags: <defaults>
</compile_context>

<pallas_src>
import functools

import jax
import jax.numpy as jnp
from jax.experimental import pallas as pl
from jax.experimental.pallas import tpu as pltpu


def _classifier_head_kernel(x_ref, w_ref, b_ref, o_ref, acc_ref,
                            *, true_s, ts, cw, n_chunks, ragged, inv_s):
    """S-tiled AdaptiveAvgPool3d((1,1,1)) + Conv3d(kernel_size=1) head.

    x_ref  : [BB, C, TS]   one spatial tile of BB batch rows
    w_ref  : [C, K]        pre-transposed weight (constant index_map)
    b_ref  : [1, K]        bias
    o_ref  : [BB, K]       output logits for this batch block
    acc_ref: [BB, C, cw]   lane-blocked running spatial sum (f32 VMEM scratch)
    """
    s = pl.program_id(1)

    @pl.when(s == 0)
    def _():
        acc_ref[...] = jnp.zeros_like(acc_ref)

    def accumulate(apply_mask):
        # Lane-blocked accumulation: one (BB, C, cw) load + VALU add per chunk.
        for i in range(n_chunks):
            chunk = x_ref[:, :, i * cw:(i + 1) * cw].astype(jnp.float32)
            if apply_mask:
                # Elements at global spatial index >= true_s are out of bounds
                # (stale VMEM from the clamped boundary DMA) -> zero them.
                rem = true_s - s * ts
                lane = jax.lax.broadcasted_iota(jnp.int32, (1, 1, cw), 2)
                chunk = jnp.where(lane + i * cw < rem, chunk, 0.0)
            acc_ref[...] += chunk

    if ragged:
        last = pl.num_programs(1) - 1

        @pl.when(s != last)
        def _():
            accumulate(False)

        @pl.when(s == last)
        def _():
            accumulate(True)
    else:
        accumulate(False)

    @pl.when(s == pl.num_programs(1) - 1)
    def _():
        # Single cross-lane reduce per batch block, then mean over the true S.
        pooled = jnp.sum(acc_ref[...], axis=-1) * inv_s          # [BB, C] f32
        # Dropout3d: identity in eval mode.
        # Conv3d 1x1x1 with bias == linear layer on pooled features.
        out = jnp.dot(pooled, w_ref[...].astype(jnp.float32),
                      preferred_element_type=jnp.float32)
        out = out + b_ref[...].astype(jnp.float32)               # [BB, K]
        o_ref[...] = out.astype(o_ref.dtype)


def classifier_forward(x_ncdhw, weight, bias, *, tile_bytes_target=2 * 1024 * 1024):
    """x_ncdhw: [B, C, T, H, W]  (PyTorch NCDHW convention)
       weight : [num_class, C, 1, 1, 1]
       bias   : [num_class]
       returns: [B, num_class, 1, 1, 1]
    """
    B, C, T, H, W = x_ncdhw.shape
    K = weight.shape[0]
    S = T * H * W

    x = x_ncdhw.reshape(B, C, S)                 # contiguous reshape (free)
    w_t = weight.reshape(K, C).T                 # one-time transpose -> [C, K]
    b = bias.reshape(1, K)
    itemsize = x.dtype.itemsize

    # --- Spatial tile size: multiple of 128, sized toward tile_bytes_target,
    # --- never exceeding S (ragged tail handled by in-kernel masking).
    if S <= 128:
        TS = S                                   # full-dim block (always legal)
    else:
        ts_from_bytes = max(128, (tile_bytes_target // (C * itemsize)) // 128 * 128)
        TS = min(ts_from_bytes, (S // 128) * 128)
    n_s = pl.cdiv(S, TS)
    ragged = (S % TS) != 0
    cw = min(TS, 128)                            # accumulator lane width
    n_chunks = TS // cw

    # --- Batch rows per grid step: largest divisor of B that keeps the x tile
    # --- under the byte target (helps when C*TS is small).
    BB = 1
    for cand in range(B, 0, -1):
        if B % cand == 0 and cand * C * TS * itemsize <= tile_bytes_target:
            BB = cand
            break

    # --- VMEM budget: double-buffered x tile + weight/bias buffers +
    # --- accumulator + output, with headroom; capped for v7x's 64 MiB part.
    need = (2 * BB * C * TS * itemsize           # x double buffer
            + 2 * (C * K + K) * 4                # weight + bias buffers
            + BB * C * cw * 4                    # accumulator scratch
            + 2 * BB * K * 4)                    # output buffers
    vmem_limit = int(min(48 * 1024 * 1024, max(32 * 1024 * 1024, 2 * need)))

    kernel = functools.partial(
        _classifier_head_kernel,
        true_s=S, ts=TS, cw=cw, n_chunks=n_chunks, ragged=ragged,
        inv_s=1.0 / float(S))

    out = pl.pallas_call(
        kernel,
        out_shape=jax.ShapeDtypeStruct((B, K), x.dtype),
        grid_spec=pltpu.PrefetchScalarGridSpec(
            num_scalar_prefetch=0,
            grid=(B // BB, n_s),                 # reduction axis last
            in_specs=[
                pl.BlockSpec((BB, C, TS), lambda bi, si: (bi, 0, si)),  # x tile
                pl.BlockSpec((C, K), lambda bi, si: (0, 0)),            # weight
                pl.BlockSpec((1, K), lambda bi, si: (0, 0)),            # bias
            ],
            out_specs=pl.BlockSpec((BB, K), lambda bi, si: (bi, 0)),
            scratch_shapes=[pltpu.VMEM((BB, C, cw), jnp.float32)],
        ),
        compiler_params=pltpu.CompilerParams(
            dimension_semantics=("parallel", "arbitrary"),
            vmem_limit_bytes=vmem_limit,
        ),
    )(x, w_t, b)

    return out.reshape(B, K, 1, 1, 1)


def reference_forward(x_ncdhw, weight, bias):
    """Pure-JAX reference matching the PyTorch forward (eval mode)."""
    pooled = jnp.mean(x_ncdhw.astype(jnp.float32), axis=(2, 3, 4))   # [B, C]
    w = weight.reshape(weight.shape[0], weight.shape[1])             # [K, C]
    out = pooled @ w.T + bias[None, :]
    return out.reshape(x_ncdhw.shape[0], weight.shape[0], 1, 1, 1).astype(x_ncdhw.dtype)


if __name__ == "__main__":
    # Small, synthetic shapes consistent with the module's forward.
    # S = 4*14*14 = 784 is NOT a multiple of 128, exercising the in-kernel
    # ragged-tail masking and multi-tile (TS=768 -> 2 spatial tiles) path.
    B, C, T, H, W = 2, 64, 4, 14, 14     # C plays the role of feature_size
    num_class = 16

    key = jax.random.PRNGKey(0)
    kx, kw = jax.random.split(key)

    x = jax.random.normal(kx, (B, C, T, H, W), dtype=jnp.float32)

    # Conv3d(feature_size, num_class, kernel_size=1, bias=True)
    # weight ~ Normal(0, 0.01), bias = 0  (matches nn.init in __init__)
    weight = 0.01 * jax.random.normal(kw, (num_class, C, 1, 1, 1), dtype=jnp.float32)
    bias = jnp.zeros((num_class,), dtype=jnp.float32)

    out = classifier_forward(x, weight, bias)
    out = jax.block_until_ready(out)

    ref = reference_forward(x, weight, bias)
    assert out.shape == (B, num_class, 1, 1, 1), out.shape
    assert jnp.allclose(out, ref, atol=1e-5, rtol=1e-5), "mismatch vs reference"

    print("KERNEL_OK")
</pallas_src>

<mosaic_0001>
module attributes {stable_mosaic.version = 11 : i64} {
  func.func @_classifier_head_kernel(%arg0: i32, %arg1: i32, %arg2: memref<2x64x768xf32, #tpu.memory_space<vmem>>, %arg3: memref<64x16xf32, #tpu.memory_space<vmem>>, %arg4: memref<1x16xf32, #tpu.memory_space<vmem>>, %arg5: memref<2x16xf32, #tpu.memory_space<vmem>>, %arg6: memref<2x64x128xf32, #tpu.memory_space<vmem>>) attributes {dimension_semantics = [#tpu.dimension_semantics<parallel>, #tpu.dimension_semantics<arbitrary>], iteration_bounds = array<i64: 1, 2>, scalar_prefetch = 0 : i64, scratch_operands = 1 : i64, tpu.core_type = #tpu.core_type<tc>, window_params = [{transform_indices = @transform_0, window_bounds = array<i64: 2, 64, 768>}, {pipeline_mode = #tpu.pipeline_mode<synchronous>, transform_indices = @transform_1, window_bounds = array<i64: 64, 16>}, {pipeline_mode = #tpu.pipeline_mode<synchronous>, transform_indices = @transform_2, window_bounds = array<i64: 1, 16>}, {transform_indices = @transform_3, window_bounds = array<i64: 2, 16>}]} {
    %c0_i32 = arith.constant 0 : i32
    %0 = arith.cmpi eq, %arg1, %c0_i32 : i32
    %1 = arith.extui %0 : i1 to i32
    %c0_i32_0 = arith.constant 0 : i32
    %2 = arith.cmpi ne, %1, %c0_i32_0 : i32
    scf.if %2 {
      %cst = arith.constant 0.000000e+00 : f32
      %12 = vector.broadcast %cst : f32 to vector<2x64x128xf32>
      %c0 = arith.constant 0 : index
      %c0_6 = arith.constant 0 : index
      %c0_7 = arith.constant 0 : index
      %13 = vector.load %arg6[%c0, %c0_6, %c0_7] : memref<2x64x128xf32, #tpu.memory_space<vmem>>, vector<2x64x128xf32>
      tpu.vector_store %arg6[%c0, %c0_6, %c0_7], %12 {strides = array<i32>} : memref<2x64x128xf32, #tpu.memory_space<vmem>>, vector<2x64x128xf32>,
    } else {
    }
    %c1_i32 = arith.constant 1 : i32
    %3 = arith.cmpi ne, %arg1, %c1_i32 : i32
    %4 = arith.extui %3 : i1 to i32
    %c0_i32_1 = arith.constant 0 : i32
    %5 = arith.cmpi ne, %4, %c0_i32_1 : i32
    scf.if %5 {
      %c0 = arith.constant 0 : index
      %c0_6 = arith.constant 0 : index
      %c0_7 = arith.constant 0 : index
      %12 = vector.load %arg2[%c0, %c0_6, %c0_7] : memref<2x64x768xf32, #tpu.memory_space<vmem>>, vector<2x64x128xf32>
      %c0_8 = arith.constant 0 : index
      %c0_9 = arith.constant 0 : index
      %c0_10 = arith.constant 0 : index
      %13 = vector.load %arg6[%c0_8, %c0_9, %c0_10] : memref<2x64x128xf32, #tpu.memory_space<vmem>>, vector<2x64x128xf32>
      %14 = arith.addf %13, %12 : vector<2x64x128xf32>
      %c0_11 = arith.constant 0 : index
      %c0_12 = arith.constant 0 : index
      %c0_13 = arith.constant 0 : index
      %15 = vector.load %arg6[%c0_11, %c0_12, %c0_13] : memref<2x64x128xf32, #tpu.memory_space<vmem>>, vector<2x64x128xf32>
      tpu.vector_store %arg6[%c0_11, %c0_12, %c0_13], %14 {strides = array<i32>} : memref<2x64x128xf32, #tpu.memory_space<vmem>>, vector<2x64x128xf32>,
      %c0_14 = arith.constant 0 : index
      %c0_15 = arith.constant 0 : index
      %c128 = arith.constant 128 : index
      %16 = vector.load %arg2[%c0_14, %c0_15, %c128] : memref<2x64x768xf32, #tpu.memory_space<vmem>>, vector<2x64x128xf32>
      %c0_16 = arith.constant 0 : index
      %c0_17 = arith.constant 0 : index
      %c0_18 = arith.constant 0 : index
      %17 = vector.load %arg6[%c0_16, %c0_17, %c0_18] : memref<2x64x128xf32, #tpu.memory_space<vmem>>, vector<2x64x128xf32>
      %18 = arith.addf %17, %16 : vector<2x64x128xf32>
      %c0_19 = arith.constant 0 : index
      %c0_20 = arith.constant 0 : index
      %c0_21 = arith.constant 0 : index
      %19 = vector.load %arg6[%c0_19, %c0_20, %c0_21] : memref<2x64x128xf32, #tpu.memory_space<vmem>>, vector<2x64x128xf32>
      tpu.vector_store %arg6[%c0_19, %c0_20, %c0_21], %18 {strides = array<i32>} : memref<2x64x128xf32, #tpu.memory_space<vmem>>, vector<2x64x128xf32>,
      %c0_22 = arith.constant 0 : index
      %c0_23 = arith.constant 0 : index
      %c256 = arith.constant 256 : index
      %20 = vector.load %arg2[%c0_22, %c0_23, %c256] : memref<2x64x768xf32, #tpu.memory_space<vmem>>, vector<2x64x128xf32>
      %c0_24 = arith.constant 0 : index
      %c0_25 = arith.constant 0 : index
      %c0_26 = arith.constant 0 : index
      %21 = vector.load %arg6[%c0_24, %c0_25, %c0_26] : memref<2x64x128xf32, #tpu.memory_space<vmem>>, vector<2x64x128xf32>
      %22 = arith.addf %21, %20 : vector<2x64x128xf32>
      %c0_27 = arith.constant 0 : index
      %c0_28 = arith.constant 0 : index
      %c0_29 = arith.constant 0 : index
      %23 = vector.load %arg6[%c0_27, %c0_28, %c0_29] : memref<2x64x128xf32, #tpu.memory_space<vmem>>, vector<2x64x128xf32>
      tpu.vector_store %arg6[%c0_27, %c0_28, %c0_29], %22 {strides = array<i32>} : memref<2x64x128xf32, #tpu.memory_space<vmem>>, vector<2x64x128xf32>,
      %c0_30 = arith.constant 0 : index
      %c0_31 = arith.constant 0 : index
      %c384 = arith.constant 384 : index
      %24 = vector.load %arg2[%c0_30, %c0_31, %c384] : memref<2x64x768xf32, #tpu.memory_space<vmem>>, vector<2x64x128xf32>
      %c0_32 = arith.constant 0 : index
      %c0_33 = arith.constant 0 : index
      %c0_34 = arith.constant 0 : index
      %25 = vector.load %arg6[%c0_32, %c0_33, %c0_34] : memref<2x64x128xf32, #tpu.memory_space<vmem>>, vector<2x64x128xf32>
      %26 = arith.addf %25, %24 : vector<2x64x128xf32>
      %c0_35 = arith.constant 0 : index
      %c0_36 = arith.constant 0 : index
      %c0_37 = arith.constant 0 : index
      %27 = vector.load %arg6[%c0_35, %c0_36, %c0_37] : memref<2x64x128xf32, #tpu.memory_space<vmem>>, vector<2x64x128xf32>
      tpu.vector_store %arg6[%c0_35, %c0_36, %c0_37], %26 {strides = array<i32>} : memref<2x64x128xf32, #tpu.memory_space<vmem>>, vector<2x64x128xf32>,
      %c0_38 = arith.constant 0 : index
      %c0_39 = arith.constant 0 : index
      %c512 = arith.constant 512 : index
      %28 = vector.load %arg2[%c0_38, %c0_39, %c512] : memref<2x64x768xf32, #tpu.memory_space<vmem>>, vector<2x64x128xf32>
      %c0_40 = arith.constant 0 : index
      %c0_41 = arith.constant 0 : index
      %c0_42 = arith.constant 0 : index
      %29 = vector.load %arg6[%c0_40, %c0_41, %c0_42] : memref<2x64x128xf32, #tpu.memory_space<vmem>>, vector<2x64x128xf32>
      %30 = arith.addf %29, %28 : vector<2x64x128xf32>
      %c0_43 = arith.constant 0 : index
      %c0_44 = arith.constant 0 : index
      %c0_45 = arith.constant 0 : index
      %31 = vector.load %arg6[%c0_43, %c0_44, %c0_45] : memref<2x64x128xf32, #tpu.memory_space<vmem>>, vector<2x64x128xf32>
      tpu.vector_store %arg6[%c0_43, %c0_44, %c0_45], %30 {strides = array<i32>} : memref<2x64x128xf32, #tpu.memory_space<vmem>>, vector<2x64x128xf32>,
      %c0_46 = arith.constant 0 : index
      %c0_47 = arith.constant 0 : index
      %c640 = arith.constant 640 : index
      %32 = vector.load %arg2[%c0_46, %c0_47, %c640] : memref<2x64x768xf32, #tpu.memory_space<vmem>>, vector<2x64x128xf32>
      %c0_48 = arith.constant 0 : index
      %c0_49 = arith.constant 0 : index
      %c0_50 = arith.constant 0 : index
      %33 = vector.load %arg6[%c0_48, %c0_49, %c0_50] : memref<2x64x128xf32, #tpu.memory_space<vmem>>, vector<2x64x128xf32>
      %34 = arith.addf %33, %32 : vector<2x64x128xf32>
      %c0_51 = arith.constant 0 : index
      %c0_52 = arith.constant 0 : index
      %c0_53 = arith.constant 0 : index
      %35 = vector.load %arg6[%c0_51, %c0_52, %c0_53] : memref<2x64x128xf32, #tpu.memory_space<vmem>>, vector<2x64x128xf32>
      tpu.vector_store %arg6[%c0_51, %c0_52, %c0_53], %34 {strides = array<i32>} : memref<2x64x128xf32, #tpu.memory_space<vmem>>, vector<2x64x128xf32>,
    } else {
    }
    %c1_i32_2 = arith.constant 1 : i32
    %6 = arith.cmpi eq, %arg1, %c1_i32_2 : i32
    %7 = arith.extui %6 : i1 to i32
    %c0_i32_3 = arith.constant 0 : i32
    %8 = arith.cmpi ne, %7, %c0_i32_3 : i32
    scf.if %8 {
      %c0 = arith.constant 0 : index
      %c0_6 = arith.constant 0 : index
      %c0_7 = arith.constant 0 : index
      %12 = vector.load %arg2[%c0, %c0_6, %c0_7] : memref<2x64x768xf32, #tpu.memory_space<vmem>>, vector<2x64x128xf32>
      %c768_i32 = arith.constant 768 : i32
      %13 = arith.muli %arg1, %c768_i32 : i32
      %c784_i32 = arith.constant 784 : i32
      %14 = arith.subi %c784_i32, %13 : i32
      %15 = tpu.iota {dimensions = array<i32: 2>} : vector<1x1x128xi32>
      %c0_i32_8 = arith.constant 0 : i32
      %16 = vector.broadcast %c0_i32_8 : i32 to vector<1x1x128xi32>
      %17 = arith.addi %15, %16 : vector<1x1x128xi32>
      %18 = vector.broadcast %14 : i32 to vector<1x1x128xi32>
      %19 = arith.cmpi slt, %17, %18 : vector<1x1x128xi32>
      %cst = arith.constant 0.000000e+00 : f32
      %20 = vector.shape_cast %19 : vector<1x1x128xi1> to vector<1x1x128xi1>
      %21 = vector.broadcast %20 : vector<1x1x128xi1> to vector<2x64x128xi1>
      %22 = vector.broadcast %cst : f32 to vector<2x64x128xf32>
      %23 = arith.select %21, %12, %22 : vector<2x64x128xi1>, vector<2x64x128xf32>
      %c0_9 = arith.constant 0 : index
      %c0_10 = arith.constant 0 : index
      %c0_11 = arith.constant 0 : index
      %24 = vector.load %arg6[%c0_9, %c0_10, %c0_11] : memref<2x64x128xf32, #tpu.memory_space<vmem>>, vector<2x64x128xf32>
      %25 = arith.addf %24, %23 : vector<2x64x128xf32>
      %c0_12 = arith.constant 0 : index
      %c0_13 = arith.constant 0 : index
      %c0_14 = arith.constant 0 : index
      %26 = vector.load %arg6[%c0_12, %c0_13, %c0_14] : memref<2x64x128xf32, #tpu.memory_space<vmem>>, vector<2x64x128xf32>
      tpu.vector_store %arg6[%c0_12, %c0_13, %c0_14], %25 {strides = array<i32>} : memref<2x64x128xf32, #tpu.memory_space<vmem>>, vector<2x64x128xf32>,
      %c0_15 = arith.constant 0 : index
      %c0_16 = arith.constant 0 : index
      %c128 = arith.constant 128 : index
      %27 = vector.load %arg2[%c0_15, %c0_16, %c128] : memref<2x64x768xf32, #tpu.memory_space<vmem>>, vector<2x64x128xf32>
      %c768_i32_17 = arith.constant 768 : i32
      %28 = arith.muli %arg1, %c768_i32_17 : i32
      %c784_i32_18 = arith.constant 784 : i32
      %29 = arith.subi %c784_i32_18, %28 : i32
      %30 = tpu.iota {dimensions = array<i32: 2>} : vector<1x1x128xi32>
      %c128_i32 = arith.constant 128 : i32
      %31 = vector.broadcast %c128_i32 : i32 to vector<1x1x128xi32>
      %32 = arith.addi %30, %31 : vector<1x1x128xi32>
      %33 = vector.broadcast %29 : i32 to vector<1x1x128xi32>
      %34 = arith.cmpi slt, %32, %33 : vector<1x1x128xi32>
      %cst_19 = arith.constant 0.000000e+00 : f32
      %35 = vector.shape_cast %34 : vector<1x1x128xi1> to vector<1x1x128xi1>
      %36 = vector.broadcast %35 : vector<1x1x128xi1> to vector<2x64x128xi1>
      %37 = vector.broadcast %cst_19 : f32 to vector<2x64x128xf32>
      %38 = arith.select %36, %27, %37 : vector<2x64x128xi1>, vector<2x64x128xf32>
      %c0_20 = arith.constant 0 : index
      %c0_21 = arith.constant 0 : index
      %c0_22 = arith.constant 0 : index
      %39 = vector.load %arg6[%c0_20, %c0_21, %c0_22] : memref<2x64x128xf32, #tpu.memory_space<vmem>>, vector<2x64x128xf32>
      %40 = arith.addf %39, %38 : vector<2x64x128xf32>
      %c0_23 = arith.constant 0 : index
      %c0_24 = arith.constant 0 : index
      %c0_25 = arith.constant 0 : index
      %41 = vector.load %arg6[%c0_23, %c0_24, %c0_25] : memref<2x64x128xf32, #tpu.memory_space<vmem>>, vector<2x64x128xf32>
      tpu.vector_store %arg6[%c0_23, %c0_24, %c0_25], %40 {strides = array<i32>} : memref<2x64x128xf32, #tpu.memory_space<vmem>>, vector<2x64x128xf32>,
      %c0_26 = arith.constant 0 : index
      %c0_27 = arith.constant 0 : index
      %c256 = arith.constant 256 : index
      %42 = vector.load %arg2[%c0_26, %c0_27, %c256] : memref<2x64x768xf32, #tpu.memory_space<vmem>>, vector<2x64x128xf32>
      %c768_i32_28 = arith.constant 768 : i32
      %43 = arith.muli %arg1, %c768_i32_28 : i32
      %c784_i32_29 = arith.constant 784 : i32
      %44 = arith.subi %c784_i32_29, %43 : i32
      %45 = tpu.iota {dimensions = array<i32: 2>} : vector<1x1x128xi32>
      %c256_i32 = arith.constant 256 : i32
      %46 = vector.broadcast %c256_i32 : i32 to vector<1x1x128xi32>
      %47 = arith.addi %45, %46 : vector<1x1x128xi32>
      %48 = vector.broadcast %44 : i32 to vector<1x1x128xi32>
      %49 = arith.cmpi slt, %47, %48 : vector<1x1x128xi32>
      %cst_30 = arith.constant 0.000000e+00 : f32
      %50 = vector.shape_cast %49 : vector<1x1x128xi1> to vector<1x1x128xi1>
      %51 = vector.broadcast %50 : vector<1x1x128xi1> to vector<2x64x128xi1>
      %52 = vector.broadcast %cst_30 : f32 to vector<2x64x128xf32>
      %53 = arith.select %51, %42, %52 : vector<2x64x128xi1>, vector<2x64x128xf32>
      %c0_31 = arith.constant 0 : index
      %c0_32 = arith.constant 0 : index
      %c0_33 = arith.constant 0 : index
      %54 = vector.load %arg6[%c0_31, %c0_32, %c0_33] : memref<2x64x128xf32, #tpu.memory_space<vmem>>, vector<2x64x128xf32>
      %55 = arith.addf %54, %53 : vector<2x64x128xf32>
      %c0_34 = arith.constant 0 : index
      %c0_35 = arith.constant 0 : index
      %c0_36 = arith.constant 0 : index
      %56 = vector.load %arg6[%c0_34, %c0_35, %c0_36] : memref<2x64x128xf32, #tpu.memory_space<vmem>>, vector<2x64x128xf32>
      tpu.vector_store %arg6[%c0_34, %c0_35, %c0_36], %55 {strides = array<i32>} : memref<2x64x128xf32, #tpu.memory_space<vmem>>, vector<2x64x128xf32>,
      %c0_37 = arith.constant 0 : index
      %c0_38 = arith.constant 0 : index
      %c384 = arith.constant 384 : index
      %57 = vector.load %arg2[%c0_37, %c0_38, %c384] : memref<2x64x768xf32, #tpu.memory_space<vmem>>, vector<2x64x128xf32>
      %c768_i32_39 = arith.constant 768 : i32
      %58 = arith.muli %arg1, %c768_i32_39 : i32
      %c784_i32_40 = arith.constant 784 : i32
      %59 = arith.subi %c784_i32_40, %58 : i32
      %60 = tpu.iota {dimensions = array<i32: 2>} : vector<1x1x128xi32>
      %c384_i32 = arith.constant 384 : i32
      %61 = vector.broadcast %c384_i32 : i32 to vector<1x1x128xi32>
      %62 = arith.addi %60, %61 : vector<1x1x128xi32>
      %63 = vector.broadcast %59 : i32 to vector<1x1x128xi32>
      %64 = arith.cmpi slt, %62, %63 : vector<1x1x128xi32>
      %cst_41 = arith.constant 0.000000e+00 : f32
      %65 = vector.shape_cast %64 : vector<1x1x128xi1> to vector<1x1x128xi1>
      %66 = vector.broadcast %65 : vector<1x1x128xi1> to vector<2x64x128xi1>
      %67 = vector.broadcast %cst_41 : f32 to vector<2x64x128xf32>
      %68 = arith.select %66, %57, %67 : vector<2x64x128xi1>, vector<2x64x128xf32>
      %c0_42 = arith.constant 0 : index
      %c0_43 = arith.constant 0 : index
      %c0_44 = arith.constant 0 : index
      %69 = vector.load %arg6[%c0_42, %c0_43, %c0_44] : memref<2x64x128xf32, #tpu.memory_space<vmem>>, vector<2x64x128xf32>
      %70 = arith.addf %69, %68 : vector<2x64x128xf32>
      %c0_45 = arith.constant 0 : index
      %c0_46 = arith.constant 0 : index
      %c0_47 = arith.constant 0 : index
      %71 = vector.load %arg6[%c0_45, %c0_46, %c0_47] : memref<2x64x128xf32, #tpu.memory_space<vmem>>, vector<2x64x128xf32>
      tpu.vector_store %arg6[%c0_45, %c0_46, %c0_47], %70 {strides = array<i32>} : memref<2x64x128xf32, #tpu.memory_space<vmem>>, vector<2x64x128xf32>,
      %c0_48 = arith.constant 0 : index
      %c0_49 = arith.constant 0 : index
      %c512 = arith.constant 512 : index
      %72 = vector.load %arg2[%c0_48, %c0_49, %c512] : memref<2x64x768xf32, #tpu.memory_space<vmem>>, vector<2x64x128xf32>
      %c768_i32_50 = arith.constant 768 : i32
      %73 = arith.muli %arg1, %c768_i32_50 : i32
      %c784_i32_51 = arith.constant 784 : i32
      %74 = arith.subi %c784_i32_51, %73 : i32
      %75 = tpu.iota {dimensions = array<i32: 2>} : vector<1x1x128xi32>
      %c512_i32 = arith.constant 512 : i32
      %76 = vector.broadcast %c512_i32 : i32 to vector<1x1x128xi32>
      %77 = arith.addi %75, %76 : vector<1x1x128xi32>
      %78 = vector.broadcast %74 : i32 to vector<1x1x128xi32>
      %79 = arith.cmpi slt, %77, %78 : vector<1x1x128xi32>
      %cst_52 = arith.constant 0.000000e+00 : f32
      %80 = vector.shape_cast %79 : vector<1x1x128xi1> to vector<1x1x128xi1>
      %81 = vector.broadcast %80 : vector<1x1x128xi1> to vector<2x64x128xi1>
      %82 = vector.broadcast %cst_52 : f32 to vector<2x64x128xf32>
      %83 = arith.select %81, %72, %82 : vector<2x64x128xi1>, vector<2x64x128xf32>
      %c0_53 = arith.constant 0 : index
      %c0_54 = arith.constant 0 : index
      %c0_55 = arith.constant 0 : index
      %84 = vector.load %arg6[%c0_53, %c0_54, %c0_55] : memref<2x64x128xf32, #tpu.memory_space<vmem>>, vector<2x64x128xf32>
      %85 = arith.addf %84, %83 : vector<2x64x128xf32>
      %c0_56 = arith.constant 0 : index
      %c0_57 = arith.constant 0 : index
      %c0_58 = arith.constant 0 : index
      %86 = vector.load %arg6[%c0_56, %c0_57, %c0_58] : memref<2x64x128xf32, #tpu.memory_space<vmem>>, vector<2x64x128xf32>
      tpu.vector_store %arg6[%c0_56, %c0_57, %c0_58], %85 {strides = array<i32>} : memref<2x64x128xf32, #tpu.memory_space<vmem>>, vector<2x64x128xf32>,
      %c0_59 = arith.constant 0 : index
      %c0_60 = arith.constant 0 : index
      %c640 = arith.constant 640 : index
      %87 = vector.load %arg2[%c0_59, %c0_60, %c640] : memref<2x64x768xf32, #tpu.memory_space<vmem>>, vector<2x64x128xf32>
      %c768_i32_61 = arith.constant 768 : i32
      %88 = arith.muli %arg1, %c768_i32_61 : i32
      %c784_i32_62 = arith.constant 784 : i32
      %89 = arith.subi %c784_i32_62, %88 : i32
      %90 = tpu.iota {dimensions = array<i32: 2>} : vector<1x1x128xi32>
      %c640_i32 = arith.constant 640 : i32
      %91 = vector.broadcast %c640_i32 : i32 to vector<1x1x128xi32>
      %92 = arith.addi %90, %91 : vector<1x1x128xi32>
      %93 = vector.broadcast %89 : i32 to vector<1x1x128xi32>
      %94 = arith.cmpi slt, %92, %93 : vector<1x1x128xi32>
      %cst_63 = arith.constant 0.000000e+00 : f32
      %95 = vector.shape_cast %94 : vector<1x1x128xi1> to vector<1x1x128xi1>
      %96 = vector.broadcast %95 : vector<1x1x128xi1> to vector<2x64x128xi1>
      %97 = vector.broadcast %cst_63 : f32 to vector<2x64x128xf32>
      %98 = arith.select %96, %87, %97 : vector<2x64x128xi1>, vector<2x64x128xf32>
      %c0_64 = arith.constant 0 : index
      %c0_65 = arith.constant 0 : index
      %c0_66 = arith.constant 0 : index
      %99 = vector.load %arg6[%c0_64, %c0_65, %c0_66] : memref<2x64x128xf32, #tpu.memory_space<vmem>>, vector<2x64x128xf32>
      %100 = arith.addf %99, %98 : vector<2x64x128xf32>
      %c0_67 = arith.constant 0 : index
      %c0_68 = arith.constant 0 : index
      %c0_69 = arith.constant 0 : index
      %101 = vector.load %arg6[%c0_67, %c0_68, %c0_69] : memref<2x64x128xf32, #tpu.memory_space<vmem>>, vector<2x64x128xf32>
      tpu.vector_store %arg6[%c0_67, %c0_68, %c0_69], %100 {strides = array<i32>} : memref<2x64x128xf32, #tpu.memory_space<vmem>>, vector<2x64x128xf32>,
    } else {
    }
    %c1_i32_4 = arith.constant 1 : i32
    %9 = arith.cmpi eq, %arg1, %c1_i32_4 : i32
    %10 = arith.extui %9 : i1 to i32
    %c0_i32_5 = arith.constant 0 : i32
    %11 = arith.cmpi ne, %10, %c0_i32_5 : i32
    scf.if %11 {
      %c0 = arith.constant 0 : index
      %c0_6 = arith.constant 0 : index
      %c0_7 = arith.constant 0 : index
      %12 = vector.load %arg6[%c0, %c0_6, %c0_7] : memref<2x64x128xf32, #tpu.memory_space<vmem>>, vector<2x64x128xf32>
      %cst = arith.constant dense<0.000000e+00> : vector<2x64xf32>
      %13 = vector.multi_reduction <add>, %12, %cst [2] : vector<2x64x128xf32> to vector<2x64xf32>
      %cst_8 = arith.constant 0.00127551018 : f32
      %14 = vector.broadcast %cst_8 : f32 to vector<2x64xf32>
      %15 = arith.mulf %13, %14 : vector<2x64xf32>
      %c0_9 = arith.constant 0 : index
      %c0_10 = arith.constant 0 : index
      %16 = vector.load %arg3[%c0_9, %c0_10] : memref<64x16xf32, #tpu.memory_space<vmem>>, vector<64x16xf32>
      %cst_11 = arith.constant dense<0.000000e+00> : vector<2x16xf32>
      %17 = tpu.matmul %15, %16, %cst_11 {dimension_numbers = #tpu.dot_dimension_numbers<[1], [0], [0], [1], [0, 0, 1, 1], [], []>} : vector<2x64xf32>, vector<64x16xf32>, vector<2x16xf32> -> vector<2x16xf32>
      %c0_12 = arith.constant 0 : index
      %c0_13 = arith.constant 0 : index
      %18 = vector.load %arg4[%c0_12, %c0_13] : memref<1x16xf32, #tpu.memory_space<vmem>>, vector<1x16xf32>
      %19 = vector.broadcast %18 : vector<1x16xf32> to vector<2x16xf32>
      %20 = arith.addf %17, %19 : vector<2x16xf32>
      %c0_14 = arith.constant 0 : index
      %c0_15 = arith.constant 0 : index
      %21 = vector.load %arg5[%c0_14, %c0_15] : memref<2x16xf32, #tpu.memory_space<vmem>>, vector<2x16xf32>
      tpu.vector_store %arg5[%c0_14, %c0_15], %20 {strides = array<i32>} : memref<2x16xf32, #tpu.memory_space<vmem>>, vector<2x16xf32>,
    } else {
    }
    return
  }
  func.func @transform_0(%arg0: i32, %arg1: i32) -> (i32, i32, i32) {
    %c0_i32 = arith.constant 0 : i32
    %c0_i32_0 = arith.constant 0 : i32
    return %arg0, %c0_i32, %arg1 : i32, i32, i32
  }
  func.func @transform_1(%arg0: i32, %arg1: i32) -> (i32, i32) {
    %c0_i32 = arith.constant 0 : i32
    %c0_i32_0 = arith.constant 0 : i32
    %c0_i32_1 = arith.constant 0 : i32
    return %c0_i32, %c0_i32_0 : i32, i32
  }
  func.func @transform_2(%arg0: i32, %arg1: i32) -> (i32, i32) {
    %c0_i32 = arith.constant 0 : i32
    %c0_i32_0 = arith.constant 0 : i32
    %c0_i32_1 = arith.constant 0 : i32
    return %c0_i32, %c0_i32_0 : i32, i32
  }
  func.func @transform_3(%arg0: i32, %arg1: i32) -> (i32, i32) {
    %c0_i32 = arith.constant 0 : i32
    %c0_i32_0 = arith.constant 0 : i32
    return %arg0, %c0_i32 : i32, i32
  }
}

</mosaic_0001>

<llo_original>
// kernel: tpu_custom_call.1
$region0: #{tpu_custom_call.1}
  #allocation0 [shape = 'u32[]', space=smem, size = 0x4, offset = 0x4, fixed_abs, tag = 'smem constant byte address 0x4 - core index']
  #allocation1 [shape = 'u32[144,128]{1,0:T(1,128)}', space=vmem, size = 0x12000, scoped, tag = 'internal scratch']
  #allocation2 [shape = 'f32[2,64,128]{2,1,0:T(8,128)}', space=vmem, size = 0x10000, scoped, tag = 'scratch operand']
  %s0 = inlined_call_operand.hbm [shape: f32[2,64,784], index: 0, kind: input, shape index: {}]
  %s1 = inlined_call_operand.vmem [shape: f32[64,16], index: 1, kind: input, shape index: {}]
  %s2 = inlined_call_operand.vmem [shape: f32[1,16], index: 2, kind: input, shape index: {}]
  %s3 = inlined_call_operand.hbm [shape: f32[2,16], index: 3, kind: output, shape index: {}]
  %s4 = sld [smem:[#allocation0]]
  $region61: #{tpu_custom_call.1} parent=0
    _
  %s6 = ssub.s32 1, %s4
  %s7 = scalar_select 0, %s6, %s4
  $region1: #{tpu_custom_call.1} parent=0
    #allocation3 [shape = 'u8[786432]{0}', space=vmem, size = 0xc0000, scoped, tag = 'input window, operand 0']
    #allocation4 [shape = 's32[2]{0}', space=sflag, size = 0x8, scoped, tag = 'scoped memory for tpu_custom_call.1']
    #allocation5 [shape = 's32[2]{0}', space=sflag, size = 0x8, scoped, tag = 'scoped memory for tpu_custom_call.1']
    #allocation6 [shape = 'u8[1024]{0}', space=vmem, size = 0x400, scoped, tag = 'output window, operand 0, single buffered']
    %8 = vsyncpa [#allocation4], 0
    %s9 = scalar_lea.sflag [#allocation4], 1
    %10 = vsyncpa %s9, 0
    %11 = vsyncpa [#allocation5], 0
    loop: start=0, step=1, limit=4
    $region2: #{tpu_custom_call.1} parent=1 // loop_pre_header
      _
    $region3: #{tpu_custom_call.1} parent=1 // loop_header
      %s13 = sphi 0, %s17
      %p14 = scmp.ge.s32.totalorder %s13, 4
      %s20 = sphi 0, %s32
      %s21 = sphi 0, %s28
      %s22 = sphi 0, %s20
      %s23 = sphi 0, %s21
      %s24 = sphi 0, %s22
      %s25 = sphi 0, %s23
      %s37 = sphi 0, %s39
      %s40 = sphi 0, %s37
      %s41 = sphi 0, %s40
      %s57 = sphi 0, %s41
      %s61 = sphi 0, %s61
      %s63 = sphi 0, %s61
      %s64 = sphi 0, %s63
      %s78 = sphi 0, %s64
      %s82 = sphi 0, %s82
      %s84 = sphi 0, %s82
      %s85 = sphi 0, %s84
      %s99 = sphi 0, %s85
      %s105 = sphi 0, %s107
      %s108 = sphi 0, %s105
      %s109 = sphi 0, %s108
      %s125 = sphi 0, %s109
    $region4: #{tpu_custom_call.1} parent=1 // loop_header_branch
      %16 = sbr.rel (%p14) target = $region8
    $region5: #{tpu_custom_call.1} parent=1 // loop_body
      %s18 = ssub.s32 %s13, 1
      %s19 = ssub.s32 %s13, 2
      %s26 = sadd.s32 1, %s21
      %p27 = scmp.ge.s32.totalorder %s26, 2
      %s28 = scalar_select %p27, 0, %s26
      %s29 = sadd.s32 1, %s20
      %s30 = scalar_select %p27, %s29, %s20
      %p31 = scmp.ge.s32.totalorder %s30, 1
      %s32 = scalar_select %p31, 0, %s30
      %s33 = ssub.s32 %s20, %s32
      %s34 = ssub.s32 %s21, %s28
      %s35 = sor.u32 %s33, %s34
      %p36 = scmp.eq.s32.totalorder %s35, 0
      %s38 = sadd.s32 %s37, 1
      %s39 = scalar_select %p36, %s37, %s38
      %p42 = pneg %p36
      %p43 = scmp.eq.s32.totalorder %s13, 1
      %p44 = por %p42, %p43
      %p45 = scmp.ne.s32.totalorder %s37, %s40
      %p46 = scmp.eq.s32.totalorder %s13, 0
      %p47 = por %p45, %p46
      %p48 = scmp.ne.s32.totalorder %s37, %s40
      %p49 = scmp.eq.s32.totalorder %s18, 1
      %p50 = por %p48, %p49
      %p51 = scmp.ne.s32.totalorder %s40, %s41
      %p52 = scmp.eq.s32.totalorder %s18, 0
      %p53 = por %p51, %p52
      %p54 = scmp.ne.s32.totalorder %s40, %s41
      %p55 = scmp.eq.s32.totalorder %s19, 1
      %p56 = por %p54, %p55
      %p58 = scmp.ne.s32.totalorder %s41, %s57
      %p59 = scmp.eq.s32.totalorder %s19, 0
      %p60 = por %p58, %p59
      %s62 = sadd.s32 %s61, 1
      %p65 = scmp.eq.s32.totalorder %s13, 1
      %p66 = scmp.ne.s32.totalorder %s61, %s63
      %p67 = scmp.eq.s32.totalorder %s13, 0
      %p68 = por %p66, %p67
      %p69 = scmp.ne.s32.totalorder %s61, %s63
      %p70 = scmp.eq.s32.totalorder %s18, 1
      %p71 = por %p69, %p70
      %p72 = scmp.ne.s32.totalorder %s63, %s64
      %p73 = scmp.eq.s32.totalorder %s18, 0
      %p74 = por %p72, %p73
      %p75 = scmp.ne.s32.totalorder %s63, %s64
      %p76 = scmp.eq.s32.totalorder %s19, 1
      %p77 = por %p75, %p76
      %p79 = scmp.ne.s32.totalorder %s64, %s78
      %p80 = scmp.eq.s32.totalorder %s19, 0
      %p81 = por %p79, %p80
      %s83 = sadd.s32 %s82, 1
      %p86 = scmp.eq.s32.totalorder %s13, 1
      %p87 = scmp.ne.s32.totalorder %s82, %s84
      %p88 = scmp.eq.s32.totalorder %s13, 0
      %p89 = por %p87, %p88
      %p90 = scmp.ne.s32.totalorder %s82, %s84
      %p91 = scmp.eq.s32.totalorder %s18, 1
      %p92 = por %p90, %p91
      %p93 = scmp.ne.s32.totalorder %s84, %s85
      %p94 = scmp.eq.s32.totalorder %s18, 0
      %p95 = por %p93, %p94
      %p96 = scmp.ne.s32.totalorder %s84, %s85
      %p97 = scmp.eq.s32.totalorder %s19, 1
      %p98 = por %p96, %p97
      %p100 = scmp.ne.s32.totalorder %s85, %s99
      %p101 = scmp.eq.s32.totalorder %s19, 0
      %p102 = por %p100, %p101
      %s103 = ssub.s32 %s20, %s32
      %p104 = scmp.eq.s32.totalorder %s103, 0
      %s106 = sadd.s32 %s105, 1
      %s107 = scalar_select %p104, %s105, %s106
      %p110 = pneg %p104
      %p111 = scmp.eq.s32.totalorder %s13, 1
      %p112 = por %p110, %p111
      %p113 = scmp.ne.s32.totalorder %s105, %s108
      %p114 = scmp.eq.s32.totalorder %s13, 0
      %p115 = por %p113, %p114
      %p116 = scmp.ne.s32.totalorder %s105, %s108
      %p117 = scmp.eq.s32.totalorder %s18, 1
      %p118 = por %p116, %p117
      %p119 = scmp.ne.s32.totalorder %s108, %s109
      %p120 = scmp.eq.s32.totalorder %s18, 0
      %p121 = por %p119, %p120
      %p122 = scmp.ne.s32.totalorder %s108, %s109
      %p123 = scmp.eq.s32.totalorder %s19, 1
      %p124 = por %p122, %p123
      %p126 = scmp.ne.s32.totalorder %s109, %s125
      %p127 = scmp.eq.s32.totalorder %s19, 0
      %p128 = por %p126, %p127
      %p129 = scmp.le.s32.totalorder 1, %s13
      %p130 = scmp.lt.s32.totalorder %s13, 3
      %p131 = pnand %p129, %p130
      %p132 = pneg %p131
      // Predicated region
      $region9: #{tpu_custom_call.1} parent=5 // pred_check
        _
      $region10: #{tpu_custom_call.1} parent=5 // pred_check_branch
        %134 = sbr.rel (%p131) target = $region12
      $region11: #{tpu_custom_call.1} parent=5 // pred_region
        %s135 = ssub.s32 %s13, 1
        // Predicated region
        $region13: #{tpu_custom_call.1} parent=11 // pred_check
          %p136 = pneg %p74
        $region14: #{tpu_custom_call.1} parent=11 // pred_check_branch
          %138 = sbr.rel (%p136) target = $region16
        $region15: #{tpu_custom_call.1} parent=11 // pred_region
          _
        $region16: #{tpu_custom_call.1} parent=11 // pred_fallthru
          _
        // Predicated region
        $region17: #{tpu_custom_call.1} parent=11 // pred_check
          %p139 = pneg %p95
        $region18: #{tpu_custom_call.1} parent=11 // pred_check_branch
          %141 = sbr.rel (%p139) target = $region20
        $region19: #{tpu_custom_call.1} parent=11 // pred_region
          _
        $region20: #{tpu_custom_call.1} parent=11 // pred_fallthru
          _
      $region12: #{tpu_custom_call.1} parent=5 // pred_fallthru
        _
      %p142 = scmp.lt.s32.totalorder %s13, 2
      // Predicated region
      $region21: #{tpu_custom_call.1} parent=5 // pred_check
        %p143 = pneg %p142
      $region22: #{tpu_custom_call.1} parent=5 // pred_check_branch
        %145 = sbr.rel (%p143) target = $region24
      $region23: #{tpu_custom_call.1} parent=5 // pred_region
        // Predicated region
        $region25: #{tpu_custom_call.1} parent=23 // pred_check
          %p146 = pneg %p47
        $region26: #{tpu_custom_call.1} parent=23 // pred_check_branch
          %148 = sbr.rel (%p146) target = $region28
        $region27: #{tpu_custom_call.1} parent=23 // pred_region
          %s149 = sand.u32 %s37, 1
          %s150 = scalar_lea.sflag [#allocation4], %s149
          %s151 = sand.u32 %s37, 1
          %s152 = smul.addr %s151, 768
          %s153 = scalar_lea.vmem [#allocation3], %s152
          %s154 = smul.u32 2, %s20
          %s155 = smul.u32 6, %s21
          %s156 = ssub.s32 7, %s155
          %p157 = scmp.lt.s32.totalorder %s156, 6
          %s158 = scalar_select %p157, %s156, 6
          %s159 = smul.u32 2048, %s158
          %s161 = ssub.s32 12288, %s159
          %162 = vsyncadd %s150, %s161
          %p163 = scmp.ne.s32.totalorder 0, %s159
          %s164 = smul.addr %s154, 56
          %s165 = sadd.s32 %s155, %s164
          %s166 = smul.addr %s165, 128
          %s167 = scalar_lea.hbm %s0, %s166
          %s168 = smul.u32 %s158, 8
          %s169 = smul.u32 %s168, 16
          %s170 = sshll.u32 %s153, 4
          %s171 = int_to_ptr.vmem [resolvable:$true] %s170
          %s172 = sshll.u32 %s169, 4
          %176 = dma.hbm_to_vmem [thread:$0]  (%p163), %s167, %s172, %s171, %s150, 896, 768, %s168
        $region28: #{tpu_custom_call.1} parent=23 // pred_fallthru
          _
      $region24: #{tpu_custom_call.1} parent=5 // pred_fallthru
        _
      %p177 = scmp.le.s32.totalorder 1, %s13
      %p178 = scmp.lt.s32.totalorder %s13, 3
      %p179 = pnand %p177, %p178
      %p180 = pneg %p179
      // Predicated region
      $region29: #{tpu_custom_call.1} parent=5 // pred_check
        _
      $region30: #{tpu_custom_call.1} parent=5 // pred_check_branch
        %182 = sbr.rel (%p179) target = $region32
      $region31: #{tpu_custom_call.1} parent=5 // pred_region
        %s183 = ssub.s32 %s13, 1
        %s184 = sand.u32 %s40, 1
        %s185 = scalar_lea.sflag [#allocation4], %s184
        %s186 = sand.u32 %s40, 1
        %s187 = smul.addr %s186, 768
        %s188 = scalar_lea.vmem [#allocation3], %s187
        // Predicated region
        $region33: #{tpu_custom_call.1} parent=31 // pred_check
          %p189 = pneg %p53
        $region34: #{tpu_custom_call.1} parent=31 // pred_check_branch
          %191 = sbr.rel (%p189) target = $region36
        $region35: #{tpu_custom_call.1} parent=31 // pred_region
          %192 = dma.done %s185, 12288
        $region36: #{tpu_custom_call.1} parent=31 // pred_fallthru
          _
        %s193 = sand.u32 %s40, 1
        %s194 = scalar_lea.sflag [#allocation4], %s193
        %s195 = sand.u32 %s40, 1
        %s196 = smul.addr %s195, 768
        %s197 = scalar_lea.vmem [#allocation3], %s196
        %p198 = pneg %p53
        %p199 = pneg %p50
        %p200 = pneg %p74
        %p201 = pneg %p71
        %p202 = pneg %p95
        %p203 = pneg %p92
        %p204 = pneg %p121
        %p205 = pneg %p118
        %s206 = smul.u32 2, %s22
        %s207 = smul.u32 6, %s23
        %s208 = ssub.s32 7, %s207
        %p209 = scmp.lt.s32.totalorder %s208, 6
        %s210 = scalar_select %p209, %s208, 6
        %s211 = smul.u32 2048, %s210
        %p212 = scmp.eq.s32.totalorder %s23, 0
        // Predicated region
        $region37: #{tpu_custom_call.1} parent=31 // pred_check
          %p213 = pneg %p212
        $region38: #{tpu_custom_call.1} parent=31 // pred_check_branch
          %215 = sbr.rel (%p213) target = $region40
        $region39: #{tpu_custom_call.1} parent=31 // pred_region
          %216 = vst [vmem:[#allocation2] sm:$0xff] 0.0
          %217 = vst [vmem:[#allocation2 + $0x8] sm:$0xff] 0.0
          %218 = vst [vmem:[#allocation2 + $0x10] sm:$0xff] 0.0
          %219 = vst [vmem:[#allocation2 + $0x18] sm:$0xff] 0.0
          %220 = vst [vmem:[#allocation2 + $0x20] sm:$0xff] 0.0
          %221 = vst [vmem:[#allocation2 + $0x28] sm:$0xff] 0.0
          %222 = vst [vmem:[#allocation2 + $0x30] sm:$0xff] 0.0
          %223 = vst [vmem:[#allocation2 + $0x38] sm:$0xff] 0.0
          %224 = vst [vmem:[#allocation2 + $0x40] sm:$0xff] 0.0
          %225 = vst [vmem:[#allocation2 + $0x48] sm:$0xff] 0.0
          %226 = vst [vmem:[#allocation2 + $0x50] sm:$0xff] 0.0
          %227 = vst [vmem:[#allocation2 + $0x58] sm:$0xff] 0.0
          %228 = vst [vmem:[#allocation2 + $0x60] sm:$0xff] 0.0
          %229 = vst [vmem:[#allocation2 + $0x68] sm:$0xff] 0.0
          %230 = vst [vmem:[#allocation2 + $0x70] sm:$0xff] 0.0
          %231 = vst [vmem:[#allocation2 + $0x78] sm:$0xff] 0.0
        $region40: #{tpu_custom_call.1} parent=31 // pred_fallthru
          _
        %p232 = scmp.ne.s32.totalorder %s23, 1
        // Predicated region
        $region41: #{tpu_custom_call.1} parent=31 // pred_check
          %p233 = pneg %p232
        $region42: #{tpu_custom_call.1} parent=31 // pred_check_branch
          %235 = sbr.rel (%p233) target = $region44
        $region43: #{tpu_custom_call.1} parent=31 // pred_region
          %v236 = vld [vmem:[%s188] sm:$0xff]
          %v237 = vld [vmem:[%s188 + $0x30] sm:$0xff]
          %v238 = vld [vmem:[%s188 + $0x60] sm:$0xff]
          %v239 = vld [vmem:[%s188 + $0x90] sm:$0xff]
          %v240 = vld [vmem:[%s188 + $0xc0] sm:$0xff]
          %v241 = vld [vmem:[%s188 + $0xf0] sm:$0xff]
          %v242 = vld [vmem:[%s188 + $0x120] sm:$0xff]
          %v243 = vld [vmem:[%s188 + $0x150] sm:$0xff]
          %v244 = vld [vmem:[%s188 + $0x180] sm:$0xff]
          %v245 = vld [vmem:[%s188 + $0x1b0] sm:$0xff]
          %v246 = vld [vmem:[%s188 + $0x1e0] sm:$0xff]
          %v247 = vld [vmem:[%s188 + $0x210] sm:$0xff]
          %v248 = vld [vmem:[%s188 + $0x240] sm:$0xff]
          %v249 = vld [vmem:[%s188 + $0x270] sm:$0xff]
          %v250 = vld [vmem:[%s188 + $0x2a0] sm:$0xff]
          %v251 = vld [vmem:[%s188 + $0x2d0] sm:$0xff]
          %v252 = vld [vmem:[#allocation2] sm:$0xff]
          %v253 = vld [vmem:[#allocation2 + $0x8] sm:$0xff]
          %v254 = vld [vmem:[#allocation2 + $0x10] sm:$0xff]
          %v255 = vld [vmem:[#allocation2 + $0x18] sm:$0xff]
          %v256 = vld [vmem:[#allocation2 + $0x20] sm:$0xff]
          %v257 = vld [vmem:[#allocation2 + $0x28] sm:$0xff]
          %v258 = vld [vmem:[#allocation2 + $0x30] sm:$0xff]
          %v259 = vld [vmem:[#allocation2 + $0x38] sm:$0xff]
          %v260 = vld [vmem:[#allocation2 + $0x40] sm:$0xff]
          %v261 = vld [vmem:[#allocation2 + $0x48] sm:$0xff]
          %v262 = vld [vmem:[#allocation2 + $0x50] sm:$0xff]
          %v263 = vld [vmem:[#allocation2 + $0x58] sm:$0xff]
          %v264 = vld [vmem:[#allocation2 + $0x60] sm:$0xff]
          %v265 = vld [vmem:[#allocation2 + $0x68] sm:$0xff]
          %v266 = vld [vmem:[#allocation2 + $0x70] sm:$0xff]
          %v267 = vld [vmem:[#allocation2 + $0x78] sm:$0xff]
          %v268 = vadd.f32 %v252, %v236
          %v269 = vadd.f32 %v253, %v237
          %v270 = vadd.f32 %v254, %v238
          %v271 = vadd.f32 %v255, %v239
          %v272 = vadd.f32 %v256, %v240
          %v273 = vadd.f32 %v257, %v241
          %v274 = vadd.f32 %v258, %v242
          %v275 = vadd.f32 %v259, %v243
          %v276 = vadd.f32 %v260, %v244
          %v277 = vadd.f32 %v261, %v245
          %v278 = vadd.f32 %v262, %v246
          %v279 = vadd.f32 %v263, %v247
          %v280 = vadd.f32 %v264, %v248
          %v281 = vadd.f32 %v265, %v249
          %v282 = vadd.f32 %v266, %v250
          %v283 = vadd.f32 %v267, %v251
          %284 = vst [vmem:[#allocation2] sm:$0xff] %v268
          %285 = vst [vmem:[#allocation2 + $0x8] sm:$0xff] %v269
          %286 = vst [vmem:[#allocation2 + $0x10] sm:$0xff] %v270
          %287 = vst [vmem:[#allocation2 + $0x18] sm:$0xff] %v271
          %288 = vst [vmem:[#allocation2 + $0x20] sm:$0xff] %v272
          %289 = vst [vmem:[#allocation2 + $0x28] sm:$0xff] %v273
          %290 = vst [vmem:[#allocation2 + $0x30] sm:$0xff] %v274
          %291 = vst [vmem:[#allocation2 + $0x38] sm:$0xff] %v275
          %292 = vst [vmem:[#allocation2 + $0x40] sm:$0xff] %v276
          %293 = vst [vmem:[#allocation2 + $0x48] sm:$0xff] %v277
          %294 = vst [vmem:[#allocation2 + $0x50] sm:$0xff] %v278
          %295 = vst [vmem:[#allocation2 + $0x58] sm:$0xff] %v279
          %296 = vst [vmem:[#allocation2 + $0x60] sm:$0xff] %v280
          %297 = vst [vmem:[#allocation2 + $0x68] sm:$0xff] %v281
          %298 = vst [vmem:[#allocation2 + $0x70] sm:$0xff] %v282
          %299 = vst [vmem:[#allocation2 + $0x78] sm:$0xff] %v283
          %v300 = vld [vmem:[%s188 + $0x8] sm:$0xff]
          %v301 = vld [vmem:[%s188 + $0x38] sm:$0xff]
          %v302 = vld [vmem:[%s188 + $0x68] sm:$0xff]
          %v303 = vld [vmem:[%s188 + $0x98] sm:$0xff]
          %v304 = vld [vmem:[%s188 + $0xc8] sm:$0xff]
          %v305 = vld [vmem:[%s188 + $0xf8] sm:$0xff]
          %v306 = vld [vmem:[%s188 + $0x128] sm:$0xff]
          %v307 = vld [vmem:[%s188 + $0x158] sm:$0xff]
          %v308 = vld [vmem:[%s188 + $0x188] sm:$0xff]
          %v309 = vld [vmem:[%s188 + $0x1b8] sm:$0xff]
          %v310 = vld [vmem:[%s188 + $0x1e8] sm:$0xff]
          %v311 = vld [vmem:[%s188 + $0x218] sm:$0xff]
          %v312 = vld [vmem:[%s188 + $0x248] sm:$0xff]
          %v313 = vld [vmem:[%s188 + $0x278] sm:$0xff]
          %v314 = vld [vmem:[%s188 + $0x2a8] sm:$0xff]
          %v315 = vld [vmem:[%s188 + $0x2d8] sm:$0xff]
          %v316 = vld [vmem:[#allocation2] sm:$0xff]
          %v317 = vld [vmem:[#allocation2 + $0x8] sm:$0xff]
          %v318 = vld [vmem:[#allocation2 + $0x10] sm:$0xff]
          %v319 = vld [vmem:[#allocation2 + $0x18] sm:$0xff]
          %v320 = vld [vmem:[#allocation2 + $0x20] sm:$0xff]
          %v321 = vld [vmem:[#allocation2 + $0x28] sm:$0xff]
          %v322 = vld [vmem:[#allocation2 + $0x30] sm:$0xff]
          %v323 = vld [vmem:[#allocation2 + $0x38] sm:$0xff]
          %v324 = vld [vmem:[#allocation2 + $0x40] sm:$0xff]
          %v325 = vld [vmem:[#allocation2 + $0x48] sm:$0xff]
          %v326 = vld [vmem:[#allocation2 + $0x50] sm:$0xff]
          %v327 = vld [vmem:[#allocation2 + $0x58] sm:$0xff]
          %v328 = vld [vmem:[#allocation2 + $0x60] sm:$0xff]
          %v329 = vld [vmem:[#allocation2 + $0x68] sm:$0xff]
          %v330 = vld [vmem:[#allocation2 + $0x70] sm:$0xff]
          %v331 = vld [vmem:[#allocation2 + $0x78] sm:$0xff]
          %v332 = vadd.f32 %v316, %v300
          %v333 = vadd.f32 %v317, %v301
          %v334 = vadd.f32 %v318, %v302
          %v335 = vadd.f32 %v319, %v303
          %v336 = vadd.f32 %v320, %v304
          %v337 = vadd.f32 %v321, %v305
          %v338 = vadd.f32 %v322, %v306
          %v339 = vadd.f32 %v323, %v307
          %v340 = vadd.f32 %v324, %v308
          %v341 = vadd.f32 %v325, %v309
          %v342 = vadd.f32 %v326, %v310
          %v343 = vadd.f32 %v327, %v311
          %v344 = vadd.f32 %v328, %v312
          %v345 = vadd.f32 %v329, %v313
          %v346 = vadd.f32 %v330, %v314
          %v347 = vadd.f32 %v331, %v315
          %348 = vst [vmem:[#allocation2] sm:$0xff] %v332
          %349 = vst [vmem:[#allocation2 + $0x8] sm:$0xff] %v333
          %350 = vst [vmem:[#allocation2 + $0x10] sm:$0xff] %v334
          %351 = vst [vmem:[#allocation2 + $0x18] sm:$0xff] %v335
          %352 = vst [vmem:[#allocation2 + $0x20] sm:$0xff] %v336
          %353 = vst [vmem:[#allocation2 + $0x28] sm:$0xff] %v337
          %354 = vst [vmem:[#allocation2 + $0x30] sm:$0xff] %v338
          %355 = vst [vmem:[#allocation2 + $0x38] sm:$0xff] %v339
          %356 = vst [vmem:[#allocation2 + $0x40] sm:$0xff] %v340
          %357 = vst [vmem:[#allocation2 + $0x48] sm:$0xff] %v341
          %358 = vst [vmem:[#allocation2 + $0x50] sm:$0xff] %v342
          %359 = vst [vmem:[#allocation2 + $0x58] sm:$0xff] %v343
          %360 = vst [vmem:[#allocation2 + $0x60] sm:$0xff] %v344
          %361 = vst [vmem:[#allocation2 + $0x68] sm:$0xff] %v345
          %362 = vst [vmem:[#allocation2 + $0x70] sm:$0xff] %v346
          %363 = vst [vmem:[#allocation2 + $0x78] sm:$0xff] %v347
          %v364 = vld [vmem:[%s188 + $0x10] sm:$0xff]
          %v365 = vld [vmem:[%s188 + $0x40] sm:$0xff]
          %v366 = vld [vmem:[%s188 + $0x70] sm:$0xff]
          %v367 = vld [vmem:[%s188 + $0xa0] sm:$0xff]
          %v368 = vld [vmem:[%s188 + $0xd0] sm:$0xff]
          %v369 = vld [vmem:[%s188 + $0x100] sm:$0xff]
          %v370 = vld [vmem:[%s188 + $0x130] sm:$0xff]
          %v371 = vld [vmem:[%s188 + $0x160] sm:$0xff]
          %v372 = vld [vmem:[%s188 + $0x190] sm:$0xff]
          %v373 = vld [vmem:[%s188 + $0x1c0] sm:$0xff]
          %v374 = vld [vmem:[%s188 + $0x1f0] sm:$0xff]
          %v375 = vld [vmem:[%s188 + $0x220] sm:$0xff]
          %v376 = vld [vmem:[%s188 + $0x250] sm:$0xff]
          %v377 = vld [vmem:[%s188 + $0x280] sm:$0xff]
          %v378 = vld [vmem:[%s188 + $0x2b0] sm:$0xff]
          %v379 = vld [vmem:[%s188 + $0x2e0] sm:$0xff]
          %v380 = vld [vmem:[#allocation2] sm:$0xff]
          %v381 = vld [vmem:[#allocation2 + $0x8] sm:$0xff]
          %v382 = vld [vmem:[#allocation2 + $0x10] sm:$0xff]
          %v383 = vld [vmem:[#allocation2 + $0x18] sm:$0xff]
          %v384 = vld [vmem:[#allocation2 + $0x20] sm:$0xff]
          %v385 = vld [vmem:[#allocation2 + $0x28] sm:$0xff]
          %v386 = vld [vmem:[#allocation2 + $0x30] sm:$0xff]
          %v387 = vld [vmem:[#allocation2 + $0x38] sm:$0xff]
          %v388 = vld [vmem:[#allocation2 + $0x40] sm:$0xff]
          %v389 = vld [vmem:[#allocation2 + $0x48] sm:$0xff]
          %v390 = vld [vmem:[#allocation2 + $0x50] sm:$0xff]
          %v391 = vld [vmem:[#allocation2 + $0x58] sm:$0xff]
          %v392 = vld [vmem:[#allocation2 + $0x60] sm:$0xff]
          %v393 = vld [vmem:[#allocation2 + $0x68] sm:$0xff]
          %v394 = vld [vmem:[#allocation2 + $0x70] sm:$0xff]
          %v395 = vld [vmem:[#allocation2 + $0x78] sm:$0xff]
          %v396 = vadd.f32 %v380, %v364
          %v397 = vadd.f32 %v381, %v365
          %v398 = vadd.f32 %v382, %v366
          %v399 = vadd.f32 %v383, %v367
          %v400 = vadd.f32 %v384, %v368
          %v401 = vadd.f32 %v385, %v369
          %v402 = vadd.f32 %v386, %v370
          %v403 = vadd.f32 %v387, %v371
          %v404 = vadd.f32 %v388, %v372
          %v405 = vadd.f32 %v389, %v373
          %v406 = vadd.f32 %v390, %v374
          %v407 = vadd.f32 %v391, %v375
          %v408 = vadd.f32 %v392, %v376
          %v409 = vadd.f32 %v393, %v377
          %v410 = vadd.f32 %v394, %v378
          %v411 = vadd.f32 %v395, %v379
          %412 = vst [vmem:[#allocation2] sm:$0xff] %v396
          %413 = vst [vmem:[#allocation2 + $0x8] sm:$0xff] %v397
          %414 = vst [vmem:[#allocation2 + $0x10] sm:$0xff] %v398
          %415 = vst [vmem:[#allocation2 + $0x18] sm:$0xff] %v399
          %416 = vst [vmem:[#allocation2 + $0x20] sm:$0xff] %v400
          %417 = vst [vmem:[#allocation2 + $0x28] sm:$0xff] %v401
          %418 = vst [vmem:[#allocation2 + $0x30] sm:$0xff] %v402
          %419 = vst [vmem:[#allocation2 + $0x38] sm:$0xff] %v403
          %420 = vst [vmem:[#allocation2 + $0x40] sm:$0xff] %v404
          %421 = vst [vmem:[#allocation2 + $0x48] sm:$0xff] %v405
          %422 = vst [vmem:[#allocation2 + $0x50] sm:$0xff] %v406
          %423 = vst [vmem:[#allocation2 + $0x58] sm:$0xff] %v407
          %424 = vst [vmem:[#allocation2 + $0x60] sm:$0xff] %v408
          %425 = vst [vmem:[#allocation2 + $0x68] sm:$0xff] %v409
          %426 = vst [vmem:[#allocation2 + $0x70] sm:$0xff] %v410
          %427 = vst [vmem:[#allocation2 + $0x78] sm:$0xff] %v411
          %v428 = vld [vmem:[%s188 + $0x18] sm:$0xff]
          %v429 = vld [vmem:[%s188 + $0x48] sm:$0xff]
          %v430 = vld [vmem:[%s188 + $0x78] sm:$0xff]
          %v431 = vld [vmem:[%s188 + $0xa8] sm:$0xff]
          %v432 = vld [vmem:[%s188 + $0xd8] sm:$0xff]
          %v433 = vld [vmem:[%s188 + $0x108] sm:$0xff]
          %v434 = vld [vmem:[%s188 + $0x138] sm:$0xff]
          %v435 = vld [vmem:[%s188 + $0x168] sm:$0xff]
          %v436 = vld [vmem:[%s188 + $0x198] sm:$0xff]
          %v437 = vld [vmem:[%s188 + $0x1c8] sm:$0xff]
          %v438 = vld [vmem:[%s188 + $0x1f8] sm:$0xff]
          %v439 = vld [vmem:[%s188 + $0x228] sm:$0xff]
          %v440 = vld [vmem:[%s188 + $0x258] sm:$0xff]
          %v441 = vld [vmem:[%s188 + $0x288] sm:$0xff]
          %v442 = vld [vmem:[%s188 + $0x2b8] sm:$0xff]
          %v443 = vld [vmem:[%s188 + $0x2e8] sm:$0xff]
          %v444 = vld [vmem:[#allocation2] sm:$0xff]
          %v445 = vld [vmem:[#allocation2 + $0x8] sm:$0xff]
          %v446 = vld [vmem:[#allocation2 + $0x10] sm:$0xff]
          %v447 = vld [vmem:[#allocation2 + $0x18] sm:$0xff]
          %v448 = vld [vmem:[#allocation2 + $0x20] sm:$0xff]
          %v449 = vld [vmem:[#allocation2 + $0x28] sm:$0xff]
          %v450 = vld [vmem:[#allocation2 + $0x30] sm:$0xff]
          %v451 = vld [vmem:[#allocation2 + $0x38] sm:$0xff]
          %v452 = vld [vmem:[#allocation2 + $0x40] sm:$0xff]
          %v453 = vld [vmem:[#allocation2 + $0x48] sm:$0xff]
          %v454 = vld [vmem:[#allocation2 + $0x50] sm:$0xff]
          %v455 = vld [vmem:[#allocation2 + $0x58] sm:$0xff]
          %v456 = vld [vmem:[#allocation2 + $0x60] sm:$0xff]
          %v457 = vld [vmem:[#allocation2 + $0x68] sm:$0xff]
          %v458 = vld [vmem:[#allocation2 + $0x70] sm:$0xff]
          %v459 = vld [vmem:[#allocation2 + $0x78] sm:$0xff]
          %v460 = vadd.f32 %v444, %v428
          %v461 = vadd.f32 %v445, %v429
          %v462 = vadd.f32 %v446, %v430
          %v463 = vadd.f32 %v447, %v431
          %v464 = vadd.f32 %v448, %v432
          %v465 = vadd.f32 %v449, %v433
          %v466 = vadd.f32 %v450, %v434
          %v467 = vadd.f32 %v451, %v435
          %v468 = vadd.f32 %v452, %v436
          %v469 = vadd.f32 %v453, %v437
          %v470 = vadd.f32 %v454, %v438
          %v471 = vadd.f32 %v455, %v439
          %v472 = vadd.f32 %v456, %v440
          %v473 = vadd.f32 %v457, %v441
          %v474 = vadd.f32 %v458, %v442
          %v475 = vadd.f32 %v459, %v443
          %476 = vst [vmem:[#allocation2] sm:$0xff] %v460
          %477 = vst [vmem:[#allocation2 + $0x8] sm:$0xff] %v461
          %478 = vst [vmem:[#allocation2 + $0x10] sm:$0xff] %v462
          %479 = vst [vmem:[#allocation2 + $0x18] sm:$0xff] %v463
          %480 = vst [vmem:[#allocation2 + $0x20] sm:$0xff] %v464
          %481 = vst [vmem:[#allocation2 + $0x28] sm:$0xff] %v465
          %482 = vst [vmem:[#allocation2 + $0x30] sm:$0xff] %v466
          %483 = vst [vmem:[#allocation2 + $0x38] sm:$0xff] %v467
          %484 = vst [vmem:[#allocation2 + $0x40] sm:$0xff] %v468
          %485 = vst [vmem:[#allocation2 + $0x48] sm:$0xff] %v469
          %486 = vst [vmem:[#allocation2 + $0x50] sm:$0xff] %v470
          %487 = vst [vmem:[#allocation2 + $0x58] sm:$0xff] %v471
          %488 = vst [vmem:[#allocation2 + $0x60] sm:$0xff] %v472
          %489 = vst [vmem:[#allocation2 + $0x68] sm:$0xff] %v473
          %490 = vst [vmem:[#allocation2 + $0x70] sm:$0xff] %v474
          %491 = vst [vmem:[#allocation2 + $0x78] sm:$0xff] %v475
          %v492 = vld [vmem:[%s188 + $0x20] sm:$0xff]
          %v493 = vld [vmem:[%s188 + $0x50] sm:$0xff]
          %v494 = vld [vmem:[%s188 + $0x80] sm:$0xff]
          %v495 = vld [vmem:[%s188 + $0xb0] sm:$0xff]
          %v496 = vld [vmem:[%s188 + $0xe0] sm:$0xff]
          %v497 = vld [vmem:[%s188 + $0x110] sm:$0xff]
          %v498 = vld [vmem:[%s188 + $0x140] sm:$0xff]
          %v499 = vld [vmem:[%s188 + $0x170] sm:$0xff]
          %v500 = vld [vmem:[%s188 + $0x1a0] sm:$0xff]
          %v501 = vld [vmem:[%s188 + $0x1d0] sm:$0xff]
          %v502 = vld [vmem:[%s188 + $0x200] sm:$0xff]
          %v503 = vld [vmem:[%s188 + $0x230] sm:$0xff]
          %v504 = vld [vmem:[%s188 + $0x260] sm:$0xff]
          %v505 = vld [vmem:[%s188 + $0x290] sm:$0xff]
          %v506 = vld [vmem:[%s188 + $0x2c0] sm:$0xff]
          %v507 = vld [vmem:[%s188 + $0x2f0] sm:$0xff]
          %v508 = vld [vmem:[#allocation2] sm:$0xff]
          %v509 = vld [vmem:[#allocation2 + $0x8] sm:$0xff]
          %v510 = vld [vmem:[#allocation2 + $0x10] sm:$0xff]
          %v511 = vld [vmem:[#allocation2 + $0x18] sm:$0xff]
          %v512 = vld [vmem:[#allocation2 + $0x20] sm:$0xff]
          %v513 = vld [vmem:[#allocation2 + $0x28] sm:$0xff]
          %v514 = vld [vmem:[#allocation2 + $0x30] sm:$0xff]
          %v515 = vld [vmem:[#allocation2 + $0x38] sm:$0xff]
          %v516 = vld [vmem:[#allocation2 + $0x40] sm:$0xff]
          %v517 = vld [vmem:[#allocation2 + $0x48] sm:$0xff]
          %v518 = vld [vmem:[#allocation2 + $0x50] sm:$0xff]
          %v519 = vld [vmem:[#allocation2 + $0x58] sm:$0xff]
          %v520 = vld [vmem:[#allocation2 + $0x60] sm:$0xff]
          %v521 = vld [vmem:[#allocation2 + $0x68] sm:$0xff]
          %v522 = vld [vmem:[#allocation2 + $0x70] sm:$0xff]
          %v523 = vld [vmem:[#allocation2 + $0x78] sm:$0xff]
          %v524 = vadd.f32 %v508, %v492
          %v525 = vadd.f32 %v509, %v493
          %v526 = vadd.f32 %v510, %v494
          %v527 = vadd.f32 %v511, %v495
          %v528 = vadd.f32 %v512, %v496
          %v529 = vadd.f32 %v513, %v497
          %v530 = vadd.f32 %v514, %v498
          %v531 = vadd.f32 %v515, %v499
          %v532 = vadd.f32 %v516, %v500
          %v533 = vadd.f32 %v517, %v501
          %v534 = vadd.f32 %v518, %v502
          %v535 = vadd.f32 %v519, %v503
          %v536 = vadd.f32 %v520, %v504
          %v537 = vadd.f32 %v521, %v505
          %v538 = vadd.f32 %v522, %v506
          %v539 = vadd.f32 %v523, %v507
          %540 = vst [vmem:[#allocation2] sm:$0xff] %v524
          %541 = vst [vmem:[#allocation2 + $0x8] sm:$0xff] %v525
          %542 = vst [vmem:[#allocation2 + $0x10] sm:$0xff] %v526
          %543 = vst [vmem:[#allocation2 + $0x18] sm:$0xff] %v527
          %544 = vst [vmem:[#allocation2 + $0x20] sm:$0xff] %v528
          %545 = vst [vmem:[#allocation2 + $0x28] sm:$0xff] %v529
          %546 = vst [vmem:[#allocation2 + $0x30] sm:$0xff] %v530
          %547 = vst [vmem:[#allocation2 + $0x38] sm:$0xff] %v531
          %548 = vst [vmem:[#allocation2 + $0x40] sm:$0xff] %v532
          %549 = vst [vmem:[#allocation2 + $0x48] sm:$0xff] %v533
          %550 = vst [vmem:[#allocation2 + $0x50] sm:$0xff] %v534
          %551 = vst [vmem:[#allocation2 + $0x58] sm:$0xff] %v535
          %552 = vst [vmem:[#allocation2 + $0x60] sm:$0xff] %v536
          %553 = vst [vmem:[#allocation2 + $0x68] sm:$0xff] %v537
          %554 = vst [vmem:[#allocation2 + $0x70] sm:$0xff] %v538
          %555 = vst [vmem:[#allocation2 + $0x78] sm:$0xff] %v539
          %v556 = vld [vmem:[%s188 + $0x28] sm:$0xff]
          %v557 = vld [vmem:[%s188 + $0x58] sm:$0xff]
          %v558 = vld [vmem:[%s188 + $0x88] sm:$0xff]
          %v559 = vld [vmem:[%s188 + $0xb8] sm:$0xff]
          %v560 = vld [vmem:[%s188 + $0xe8] sm:$0xff]
          %v561 = vld [vmem:[%s188 + $0x118] sm:$0xff]
          %v562 = vld [vmem:[%s188 + $0x148] sm:$0xff]
          %v563 = vld [vmem:[%s188 + $0x178] sm:$0xff]
          %v564 = vld [vmem:[%s188 + $0x1a8] sm:$0xff]
          %v565 = vld [vmem:[%s188 + $0x1d8] sm:$0xff]
          %v566 = vld [vmem:[%s188 + $0x208] sm:$0xff]
          %v567 = vld [vmem:[%s188 + $0x238] sm:$0xff]
          %v568 = vld [vmem:[%s188 + $0x268] sm:$0xff]
          %v569 = vld [vmem:[%s188 + $0x298] sm:$0xff]
          %v570 = vld [vmem:[%s188 + $0x2c8] sm:$0xff]
          %v571 = vld [vmem:[%s188 + $0x2f8] sm:$0xff]
          %v572 = vld [vmem:[#allocation2] sm:$0xff]
          %v573 = vld [vmem:[#allocation2 + $0x8] sm:$0xff]
          %v574 = vld [vmem:[#allocation2 + $0x10] sm:$0xff]
          %v575 = vld [vmem:[#allocation2 + $0x18] sm:$0xff]
          %v576 = vld [vmem:[#allocation2 + $0x20] sm:$0xff]
          %v577 = vld [vmem:[#allocation2 + $0x28] sm:$0xff]
          %v578 = vld [vmem:[#allocation2 + $0x30] sm:$0xff]
          %v579 = vld [vmem:[#allocation2 + $0x38] sm:$0xff]
          %v580 = vld [vmem:[#allocation2 + $0x40] sm:$0xff]
          %v581 = vld [vmem:[#allocation2 + $0x48] sm:$0xff]
          %v582 = vld [vmem:[#allocation2 + $0x50] sm:$0xff]
          %v583 = vld [vmem:[#allocation2 + $0x58] sm:$0xff]
          %v584 = vld [vmem:[#allocation2 + $0x60] sm:$0xff]
          %v585 = vld [vmem:[#allocation2 + $0x68] sm:$0xff]
          %v586 = vld [vmem:[#allocation2 + $0x70] sm:$0xff]
          %v587 = vld [vmem:[#allocation2 + $0x78] sm:$0xff]
          %v588 = vadd.f32 %v572, %v556
          %v589 = vadd.f32 %v573, %v557
          %v590 = vadd.f32 %v574, %v558
          %v591 = vadd.f32 %v575, %v559
          %v592 = vadd.f32 %v576, %v560
          %v593 = vadd.f32 %v577, %v561
          %v594 = vadd.f32 %v578, %v562
          %v595 = vadd.f32 %v579, %v563
          %v596 = vadd.f32 %v580, %v564
          %v597 = vadd.f32 %v581, %v565
          %v598 = vadd.f32 %v582, %v566
          %v599 = vadd.f32 %v583, %v567
          %v600 = vadd.f32 %v584, %v568
          %v601 = vadd.f32 %v585, %v569
          %v602 = vadd.f32 %v586, %v570
          %v603 = vadd.f32 %v587, %v571
          %604 = vst [vmem:[#allocation2] sm:$0xff] %v588
          %605 = vst [vmem:[#allocation2 + $0x8] sm:$0xff] %v589
          %606 = vst [vmem:[#allocation2 + $0x10] sm:$0xff] %v590
          %607 = vst [vmem:[#allocation2 + $0x18] sm:$0xff] %v591
          %608 = vst [vmem:[#allocation2 + $0x20] sm:$0xff] %v592
          %609 = vst [vmem:[#allocation2 + $0x28] sm:$0xff] %v593
          %610 = vst [vmem:[#allocation2 + $0x30] sm:$0xff] %v594
          %611 = vst [vmem:[#allocation2 + $0x38] sm:$0xff] %v595
          %612 = vst [vmem:[#allocation2 + $0x40] sm:$0xff] %v596
          %613 = vst [vmem:[#allocation2 + $0x48] sm:$0xff] %v597
          %614 = vst [vmem:[#allocation2 + $0x50] sm:$0xff] %v598
          %615 = vst [vmem:[#allocation2 + $0x58] sm:$0xff] %v599
          %616 = vst [vmem:[#allocation2 + $0x60] sm:$0xff] %v600
          %617 = vst [vmem:[#allocation2 + $0x68] sm:$0xff] %v601
          %618 = vst [vmem:[#allocation2 + $0x70] sm:$0xff] %v602
          %619 = vst [vmem:[#allocation2 + $0x78] sm:$0xff] %v603
        $region44: #{tpu_custom_call.1} parent=31 // pred_fallthru
          _
        %p620 = scmp.eq.s32.totalorder %s23, 1
        // Predicated region
        $region45: #{tpu_custom_call.1} parent=31 // pred_check
          %p621 = pneg %p620
        $region46: #{tpu_custom_call.1} parent=31 // pred_check_branch
          %623 = sbr.rel (%p621) target = $region48
        $region47: #{tpu_custom_call.1} parent=31 // pred_region
          %v624 = vld [vmem:[%s188] sm:$0xff]
          %v625 = vld [vmem:[%s188 + $0x30] sm:$0xff]
          %v626 = vld [vmem:[%s188 + $0x60] sm:$0xff]
          %v627 = vld [vmem:[%s188 + $0x90] sm:$0xff]
          %v628 = vld [vmem:[%s188 + $0xc0] sm:$0xff]
          %v629 = vld [vmem:[%s188 + $0xf0] sm:$0xff]
          %v630 = vld [vmem:[%s188 + $0x120] sm:$0xff]
          %v631 = vld [vmem:[%s188 + $0x150] sm:$0xff]
          %v632 = vld [vmem:[%s188 + $0x180] sm:$0xff]
          %v633 = vld [vmem:[%s188 + $0x1b0] sm:$0xff]
          %v634 = vld [vmem:[%s188 + $0x1e0] sm:$0xff]
          %v635 = vld [vmem:[%s188 + $0x210] sm:$0xff]
          %v636 = vld [vmem:[%s188 + $0x240] sm:$0xff]
          %v637 = vld [vmem:[%s188 + $0x270] sm:$0xff]
          %v638 = vld [vmem:[%s188 + $0x2a0] sm:$0xff]
          %v639 = vld [vmem:[%s188 + $0x2d0] sm:$0xff]
          %s640 = smul.u32 %s23, 768
          %s641 = ssub.s32 784, %s640
          %v642 = vlaneseq
          %v643 = vand.u32 %v642, 127
          %v644 = vstv %s641
          %vm645 = vcmp.lt.s32.totalorder %v643, %v644
          %v646 = vsel %vm645, 1, 0
          %vm647 = vcmp.eq.s32.totalorder %v646, 1
          %v648 = vsel %vm647, %v624, 0.0
          %v649 = vsel %vm647, %v625, 0.0
          %v650 = vsel %vm647, %v626, 0.0
          %v651 = vsel %vm647, %v627, 0.0
          %v652 = vsel %vm647, %v628, 0.0
          %v653 = vsel %vm647, %v629, 0.0
          %v654 = vsel %vm647, %v630, 0.0
          %v655 = vsel %vm647, %v631, 0.0
          %v656 = vsel %vm647, %v632, 0.0
          %v657 = vsel %vm647, %v633, 0.0
          %v658 = vsel %vm647, %v634, 0.0
          %v659 = vsel %vm647, %v635, 0.0
          %v660 = vsel %vm647, %v636, 0.0
          %v661 = vsel %vm647, %v637, 0.0
          %v662 = vsel %vm647, %v638, 0.0
          %v663 = vsel %vm647, %v639, 0.0
          %v664 = vld [vmem:[#allocation2] sm:$0xff]
          %v665 = vld [vmem:[#allocation2 + $0x8] sm:$0xff]
          %v666 = vld [vmem:[#allocation2 + $0x10] sm:$0xff]
          %v667 = vld [vmem:[#allocation2 + $0x18] sm:$0xff]
          %v668 = vld [vmem:[#allocation2 + $0x20] sm:$0xff]
          %v669 = vld [vmem:[#allocation2 + $0x28] sm:$0xff]
          %v670 = vld [vmem:[#allocation2 + $0x30] sm:$0xff]
          %v671 = vld [vmem:[#allocation2 + $0x38] sm:$0xff]
          %v672 = vld [vmem:[#allocation2 + $0x40] sm:$0xff]
          %v673 = vld [vmem:[#allocation2 + $0x48] sm:$0xff]
          %v674 = vld [vmem:[#allocation2 + $0x50] sm:$0xff]
          %v675 = vld [vmem:[#allocation2 + $0x58] sm:$0xff]
          %v676 = vld [vmem:[#allocation2 + $0x60] sm:$0xff]
          %v677 = vld [vmem:[#allocation2 + $0x68] sm:$0xff]
          %v678 = vld [vmem:[#allocation2 + $0x70] sm:$0xff]
          %v679 = vld [vmem:[#allocation2 + $0x78] sm:$0xff]
          %v680 = vadd.f32 %v664, %v648
          %v681 = vadd.f32 %v665, %v649
          %v682 = vadd.f32 %v666, %v650
          %v683 = vadd.f32 %v667, %v651
          %v684 = vadd.f32 %v668, %v652
          %v685 = vadd.f32 %v669, %v653
          %v686 = vadd.f32 %v670, %v654
          %v687 = vadd.f32 %v671, %v655
          %v688 = vadd.f32 %v672, %v656
          %v689 = vadd.f32 %v673, %v657
          %v690 = vadd.f32 %v674, %v658
          %v691 = vadd.f32 %v675, %v659
          %v692 = vadd.f32 %v676, %v660
          %v693 = vadd.f32 %v677, %v661
          %v694 = vadd.f32 %v678, %v662
          %v695 = vadd.f32 %v679, %v663
          %696 = vst [vmem:[#allocation2] sm:$0xff] %v680
          %697 = vst [vmem:[#allocation2 + $0x8] sm:$0xff] %v681
          %698 = vst [vmem:[#allocation2 + $0x10] sm:$0xff] %v682
          %699 = vst [vmem:[#allocation2 + $0x18] sm:$0xff] %v683
          %700 = vst [vmem:[#allocation2 + $0x20] sm:$0xff] %v684
          %701 = vst [vmem:[#allocation2 + $0x28] sm:$0xff] %v685
          %702 = vst [vmem:[#allocation2 + $0x30] sm:$0xff] %v686
          %703 = vst [vmem:[#allocation2 + $0x38] sm:$0xff] %v687
          %704 = vst [vmem:[#allocation2 + $0x40] sm:$0xff] %v688
          %705 = vst [vmem:[#allocation2 + $0x48] sm:$0xff] %v689
          %706 = vst [vmem:[#allocation2 + $0x50] sm:$0xff] %v690
          %707 = vst [vmem:[#allocation2 + $0x58] sm:$0xff] %v691
          %708 = vst [vmem:[#allocation2 + $0x60] sm:$0xff] %v692
          %709 = vst [vmem:[#allocation2 + $0x68] sm:$0xff] %v693
          %710 = vst [vmem:[#allocation2 + $0x70] sm:$0xff] %v694
          %711 = vst [vmem:[#allocation2 + $0x78] sm:$0xff] %v695
          %v712 = vld [vmem:[%s188 + $0x8] sm:$0xff]
          %v713 = vld [vmem:[%s188 + $0x38] sm:$0xff]
          %v714 = vld [vmem:[%s188 + $0x68] sm:$0xff]
          %v715 = vld [vmem:[%s188 + $0x98] sm:$0xff]
          %v716 = vld [vmem:[%s188 + $0xc8] sm:$0xff]
          %v717 = vld [vmem:[%s188 + $0xf8] sm:$0xff]
          %v718 = vld [vmem:[%s188 + $0x128] sm:$0xff]
          %v719 = vld [vmem:[%s188 + $0x158] sm:$0xff]
          %v720 = vld [vmem:[%s188 + $0x188] sm:$0xff]
          %v721 = vld [vmem:[%s188 + $0x1b8] sm:$0xff]
          %v722 = vld [vmem:[%s188 + $0x1e8] sm:$0xff]
          %v723 = vld [vmem:[%s188 + $0x218] sm:$0xff]
          %v724 = vld [vmem:[%s188 + $0x248] sm:$0xff]
          %v725 = vld [vmem:[%s188 + $0x278] sm:$0xff]
          %v726 = vld [vmem:[%s188 + $0x2a8] sm:$0xff]
          %v727 = vld [vmem:[%s188 + $0x2d8] sm:$0xff]
          %v728 = vadd.s32 %v643, 128
          %vm729 = vcmp.lt.s32.totalorder %v728, %v644
          %v730 = vsel %vm729, 1, 0
          %vm731 = vcmp.eq.s32.totalorder %v730, 1
          %v732 = vsel %vm731, %v712, 0.0
          %v733 = vsel %vm731, %v713, 0.0
          %v734 = vsel %vm731, %v714, 0.0
          %v735 = vsel %vm731, %v715, 0.0
          %v736 = vsel %vm731, %v716, 0.0
          %v737 = vsel %vm731, %v717, 0.0
          %v738 = vsel %vm731, %v718, 0.0
          %v739 = vsel %vm731, %v719, 0.0
          %v740 = vsel %vm731, %v720, 0.0
          %v741 = vsel %vm731, %v721, 0.0
          %v742 = vsel %vm731, %v722, 0.0
          %v743 = vsel %vm731, %v723, 0.0
          %v744 = vsel %vm731, %v724, 0.0
          %v745 = vsel %vm731, %v725, 0.0
          %v746 = vsel %vm731, %v726, 0.0
          %v747 = vsel %vm731, %v727, 0.0
          %v748 = vld [vmem:[#allocation2] sm:$0xff]
          %v749 = vld [vmem:[#allocation2 + $0x8] sm:$0xff]
          %v750 = vld [vmem:[#allocation2 + $0x10] sm:$0xff]
          %v751 = vld [vmem:[#allocation2 + $0x18] sm:$0xff]
          %v752 = vld [vmem:[#allocation2 + $0x20] sm:$0xff]
          %v753 = vld [vmem:[#allocation2 + $0x28] sm:$0xff]
          %v754 = vld [vmem:[#allocation2 + $0x30] sm:$0xff]
          %v755 = vld [vmem:[#allocation2 + $0x38] sm:$0xff]
          %v756 = vld [vmem:[#allocation2 + $0x40] sm:$0xff]
          %v757 = vld [vmem:[#allocation2 + $0x48] sm:$0xff]
          %v758 = vld [vmem:[#allocation2 + $0x50] sm:$0xff]
          %v759 = vld [vmem:[#allocation2 + $0x58] sm:$0xff]
          %v760 = vld [vmem:[#allocation2 + $0x60] sm:$0xff]
          %v761 = vld [vmem:[#allocation2 + $0x68] sm:$0xff]
          %v762 = vld [vmem:[#allocation2 + $0x70] sm:$0xff]
          %v763 = vld [vmem:[#allocation2 + $0x78] sm:$0xff]
          %v764 = vadd.f32 %v748, %v732
          %v765 = vadd.f32 %v749, %v733
          %v766 = vadd.f32 %v750, %v734
          %v767 = vadd.f32 %v751, %v735
          %v768 = vadd.f32 %v752, %v736
          %v769 = vadd.f32 %v753, %v737
          %v770 = vadd.f32 %v754, %v738
          %v771 = vadd.f32 %v755, %v739
          %v772 = vadd.f32 %v756, %v740
          %v773 = vadd.f32 %v757, %v741
          %v774 = vadd.f32 %v758, %v742
          %v775 = vadd.f32 %v759, %v743
          %v776 = vadd.f32 %v760, %v744
          %v777 = vadd.f32 %v761, %v745
          %v778 = vadd.f32 %v762, %v746
          %v779 = vadd.f32 %v763, %v747
          %780 = vst [vmem:[#allocation2] sm:$0xff] %v764
          %781 = vst [vmem:[#allocation2 + $0x8] sm:$0xff] %v765
          %782 = vst [vmem:[#allocation2 + $0x10] sm:$0xff] %v766
          %783 = vst [vmem:[#allocation2 + $0x18] sm:$0xff] %v767
          %784 = vst [vmem:[#allocation2 + $0x20] sm:$0xff] %v768
          %785 = vst [vmem:[#allocation2 + $0x28] sm:$0xff] %v769
          %786 = vst [vmem:[#allocation2 + $0x30] sm:$0xff] %v770
          %787 = vst [vmem:[#allocation2 + $0x38] sm:$0xff] %v771
          %788 = vst [vmem:[#allocation2 + $0x40] sm:$0xff] %v772
          %789 = vst [vmem:[#allocation2 + $0x48] sm:$0xff] %v773
          %790 = vst [vmem:[#allocation2 + $0x50] sm:$0xff] %v774
          %791 = vst [vmem:[#allocation2 + $0x58] sm:$0xff] %v775
          %792 = vst [vmem:[#allocation2 + $0x60] sm:$0xff] %v776
          %793 = vst [vmem:[#allocation2 + $0x68] sm:$0xff] %v777
          %794 = vst [vmem:[#allocation2 + $0x70] sm:$0xff] %v778
          %795 = vst [vmem:[#allocation2 + $0x78] sm:$0xff] %v779
          %v796 = vld [vmem:[%s188 + $0x10] sm:$0xff]
          %v797 = vld [vmem:[%s188 + $0x40] sm:$0xff]
          %v798 = vld [vmem:[%s188 + $0x70] sm:$0xff]
          %v799 = vld [vmem:[%s188 + $0xa0] sm:$0xff]
          %v800 = vld [vmem:[%s188 + $0xd0] sm:$0xff]
          %v801 = vld [vmem:[%s188 + $0x100] sm:$0xff]
          %v802 = vld [vmem:[%s188 + $0x130] sm:$0xff]
          %v803 = vld [vmem:[%s188 + $0x160] sm:$0xff]
          %v804 = vld [vmem:[%s188 + $0x190] sm:$0xff]
          %v805 = vld [vmem:[%s188 + $0x1c0] sm:$0xff]
          %v806 = vld [vmem:[%s188 + $0x1f0] sm:$0xff]
          %v807 = vld [vmem:[%s188 + $0x220] sm:$0xff]
          %v808 = vld [vmem:[%s188 + $0x250] sm:$0xff]
          %v809 = vld [vmem:[%s188 + $0x280] sm:$0xff]
          %v810 = vld [vmem:[%s188 + $0x2b0] sm:$0xff]
          %v811 = vld [vmem:[%s188 + $0x2e0] sm:$0xff]
          %v812 = vadd.s32 %v643, 256
          %vm813 = vcmp.lt.s32.totalorder %v812, %v644
          %v814 = vsel %vm813, 1, 0
          %vm815 = vcmp.eq.s32.totalorder %v814, 1
          %v816 = vsel %vm815, %v796, 0.0
          %v817 = vsel %vm815, %v797, 0.0
          %v818 = vsel %vm815, %v798, 0.0
          %v819 = vsel %vm815, %v799, 0.0
          %v820 = vsel %vm815, %v800, 0.0
          %v821 = vsel %vm815, %v801, 0.0
          %v822 = vsel %vm815, %v802, 0.0
          %v823 = vsel %vm815, %v803, 0.0
          %v824 = vsel %vm815, %v804, 0.0
          %v825 = vsel %vm815, %v805, 0.0
          %v826 = vsel %vm815, %v806, 0.0
          %v827 = vsel %vm815, %v807, 0.0
          %v828 = vsel %vm815, %v808, 0.0
          %v829 = vsel %vm815, %v809, 0.0
          %v830 = vsel %vm815, %v810, 0.0
          %v831 = vsel %vm815, %v811, 0.0
          %v832 = vld [vmem:[#allocation2] sm:$0xff]
          %v833 = vld [vmem:[#allocation2 + $0x8] sm:$0xff]
          %v834 = vld [vmem:[#allocation2 + $0x10] sm:$0xff]
          %v835 = vld [vmem:[#allocation2 + $0x18] sm:$0xff]
          %v836 = vld [vmem:[#allocation2 + $0x20] sm:$0xff]
          %v837 = vld [vmem:[#allocation2 + $0x28] sm:$0xff]
          %v838 = vld [vmem:[#allocation2 + $0x30] sm:$0xff]
          %v839 = vld [vmem:[#allocation2 + $0x38] sm:$0xff]
          %v840 = vld [vmem:[#allocation2 + $0x40] sm:$0xff]
          %v841 = vld [vmem:[#allocation2 + $0x48] sm:$0xff]
          %v842 = vld [vmem:[#allocation2 + $0x50] sm:$0xff]
          %v843 = vld [vmem:[#allocation2 + $0x58] sm:$0xff]
          %v844 = vld [vmem:[#allocation2 + $0x60] sm:$0xff]
          %v845 = vld [vmem:[#allocation2 + $0x68] sm:$0xff]
          %v846 = vld [vmem:[#allocation2 + $0x70] sm:$0xff]
          %v847 = vld [vmem:[#allocation2 + $0x78] sm:$0xff]
          %v848 = vadd.f32 %v832, %v816
          %v849 = vadd.f32 %v833, %v817
          %v850 = vadd.f32 %v834, %v818
          %v851 = vadd.f32 %v835, %v819
          %v852 = vadd.f32 %v836, %v820
          %v853 = vadd.f32 %v837, %v821
          %v854 = vadd.f32 %v838, %v822
          %v855 = vadd.f32 %v839, %v823
          %v856 = vadd.f32 %v840, %v824
          %v857 = vadd.f32 %v841, %v825
          %v858 = vadd.f32 %v842, %v826
          %v859 = vadd.f32 %v843, %v827
          %v860 = vadd.f32 %v844, %v828
          %v861 = vadd.f32 %v845, %v829
          %v862 = vadd.f32 %v846, %v830
          %v863 = vadd.f32 %v847, %v831
          %864 = vst [vmem:[#allocation2] sm:$0xff] %v848
          %865 = vst [vmem:[#allocation2 + $0x8] sm:$0xff] %v849
          %866 = vst [vmem:[#allocation2 + $0x10] sm:$0xff] %v850
          %867 = vst [vmem:[#allocation2 + $0x18] sm:$0xff] %v851
          %868 = vst [vmem:[#allocation2 + $0x20] sm:$0xff] %v852
          %869 = vst [vmem:[#allocation2 + $0x28] sm:$0xff] %v853
          %870 = vst [vmem:[#allocation2 + $0x30] sm:$0xff] %v854
          %871 = vst [vmem:[#allocation2 + $0x38] sm:$0xff] %v855
          %872 = vst [vmem:[#allocation2 + $0x40] sm:$0xff] %v856
          %873 = vst [vmem:[#allocation2 + $0x48] sm:$0xff] %v857
          %874 = vst [vmem:[#allocation2 + $0x50] sm:$0xff] %v858
          %875 = vst [vmem:[#allocation2 + $0x58] sm:$0xff] %v859
          %876 = vst [vmem:[#allocation2 + $0x60] sm:$0xff] %v860
          %877 = vst [vmem:[#allocation2 + $0x68] sm:$0xff] %v861
          %878 = vst [vmem:[#allocation2 + $0x70] sm:$0xff] %v862
          %879 = vst [vmem:[#allocation2 + $0x78] sm:$0xff] %v863
          %v880 = vld [vmem:[%s188 + $0x18] sm:$0xff]
          %v881 = vld [vmem:[%s188 + $0x48] sm:$0xff]
          %v882 = vld [vmem:[%s188 + $0x78] sm:$0xff]
          %v883 = vld [vmem:[%s188 + $0xa8] sm:$0xff]
          %v884 = vld [vmem:[%s188 + $0xd8] sm:$0xff]
          %v885 = vld [vmem:[%s188 + $0x108] sm:$0xff]
          %v886 = vld [vmem:[%s188 + $0x138] sm:$0xff]
          %v887 = vld [vmem:[%s188 + $0x168] sm:$0xff]
          %v888 = vld [vmem:[%s188 + $0x198] sm:$0xff]
          %v889 = vld [vmem:[%s188 + $0x1c8] sm:$0xff]
          %v890 = vld [vmem:[%s188 + $0x1f8] sm:$0xff]
          %v891 = vld [vmem:[%s188 + $0x228] sm:$0xff]
          %v892 = vld [vmem:[%s188 + $0x258] sm:$0xff]
          %v893 = vld [vmem:[%s188 + $0x288] sm:$0xff]
          %v894 = vld [vmem:[%s188 + $0x2b8] sm:$0xff]
          %v895 = vld [vmem:[%s188 + $0x2e8] sm:$0xff]
          %v896 = vadd.s32 %v643, 384
          %vm897 = vcmp.lt.s32.totalorder %v896, %v644
          %v898 = vsel %vm897, 1, 0
          %vm899 = vcmp.eq.s32.totalorder %v898, 1
          %v900 = vsel %vm899, %v880, 0.0
          %v901 = vsel %vm899, %v881, 0.0
          %v902 = vsel %vm899, %v882, 0.0
          %v903 = vsel %vm899, %v883, 0.0
          %v904 = vsel %vm899, %v884, 0.0
          %v905 = vsel %vm899, %v885, 0.0
          %v906 = vsel %vm899, %v886, 0.0
          %v907 = vsel %vm899, %v887, 0.0
          %v908 = vsel %vm899, %v888, 0.0
          %v909 = vsel %vm899, %v889, 0.0
          %v910 = vsel %vm899, %v890, 0.0
          %v911 = vsel %vm899, %v891, 0.0
          %v912 = vsel %vm899, %v892, 0.0
          %v913 = vsel %vm899, %v893, 0.0
          %v914 = vsel %vm899, %v894, 0.0
          %v915 = vsel %vm899, %v895, 0.0
          %v916 = vld [vmem:[#allocation2] sm:$0xff]
          %v917 = vld [vmem:[#allocation2 + $0x8] sm:$0xff]
          %v918 = vld [vmem:[#allocation2 + $0x10] sm:$0xff]
          %v919 = vld [vmem:[#allocation2 + $0x18] sm:$0xff]
          %v920 = vld [vmem:[#allocation2 + $0x20] sm:$0xff]
          %v921 = vld [vmem:[#allocation2 + $0x28] sm:$0xff]
          %v922 = vld [vmem:[#allocation2 + $0x30] sm:$0xff]
          %v923 = vld [vmem:[#allocation2 + $0x38] sm:$0xff]
          %v924 = vld [vmem:[#allocation2 + $0x40] sm:$0xff]
          %v925 = vld [vmem:[#allocation2 + $0x48] sm:$0xff]
          %v926 = vld [vmem:[#allocation2 + $0x50] sm:$0xff]
          %v927 = vld [vmem:[#allocation2 + $0x58] sm:$0xff]
          %v928 = vld [vmem:[#allocation2 + $0x60] sm:$0xff]
          %v929 = vld [vmem:[#allocation2 + $0x68] sm:$0xff]
          %v930 = vld [vmem:[#allocation2 + $0x70] sm:$0xff]
          %v931 = vld [vmem:[#allocation2 + $0x78] sm:$0xff]
          %v932 = vadd.f32 %v916, %v900
          %v933 = vadd.f32 %v917, %v901
          %v934 = vadd.f32 %v918, %v902
          %v935 = vadd.f32 %v919, %v903
          %v936 = vadd.f32 %v920, %v904
          %v937 = vadd.f32 %v921, %v905
          %v938 = vadd.f32 %v922, %v906
          %v939 = vadd.f32 %v923, %v907
          %v940 = vadd.f32 %v924, %v908
          %v941 = vadd.f32 %v925, %v909
          %v942 = vadd.f32 %v926, %v910
          %v943 = vadd.f32 %v927, %v911
          %v944 = vadd.f32 %v928, %v912
          %v945 = vadd.f32 %v929, %v913
          %v946 = vadd.f32 %v930, %v914
          %v947 = vadd.f32 %v931, %v915
          %948 = vst [vmem:[#allocation2] sm:$0xff] %v932
          %949 = vst [vmem:[#allocation2 + $0x8] sm:$0xff] %v933
          %950 = vst [vmem:[#allocation2 + $0x10] sm:$0xff] %v934
          %951 = vst [vmem:[#allocation2 + $0x18] sm:$0xff] %v935
          %952 = vst [vmem:[#allocation2 + $0x20] sm:$0xff] %v936
          %953 = vst [vmem:[#allocation2 + $0x28] sm:$0xff] %v937
          %954 = vst [vmem:[#allocation2 + $0x30] sm:$0xff] %v938
          %955 = vst [vmem:[#allocation2 + $0x38] sm:$0xff] %v939
          %956 = vst [vmem:[#allocation2 + $0x40] sm:$0xff] %v940
          %957 = vst [vmem:[#allocation2 + $0x48] sm:$0xff] %v941
          %958 = vst [vmem:[#allocation2 + $0x50] sm:$0xff] %v942
          %959 = vst [vmem:[#allocation2 + $0x58] sm:$0xff] %v943
          %960 = vst [vmem:[#allocation2 + $0x60] sm:$0xff] %v944
          %961 = vst [vmem:[#allocation2 + $0x68] sm:$0xff] %v945
          %962 = vst [vmem:[#allocation2 + $0x70] sm:$0xff] %v946
          %963 = vst [vmem:[#allocation2 + $0x78] sm:$0xff] %v947
          %v964 = vld [vmem:[%s188 + $0x20] sm:$0xff]
          %v965 = vld [vmem:[%s188 + $0x50] sm:$0xff]
          %v966 = vld [vmem:[%s188 + $0x80] sm:$0xff]
          %v967 = vld [vmem:[%s188 + $0xb0] sm:$0xff]
          %v968 = vld [vmem:[%s188 + $0xe0] sm:$0xff]
          %v969 = vld [vmem:[%s188 + $0x110] sm:$0xff]
          %v970 = vld [vmem:[%s188 + $0x140] sm:$0xff]
          %v971 = vld [vmem:[%s188 + $0x170] sm:$0xff]
          %v972 = vld [vmem:[%s188 + $0x1a0] sm:$0xff]
          %v973 = vld [vmem:[%s188 + $0x1d0] sm:$0xff]
          %v974 = vld [vmem:[%s188 + $0x200] sm:$0xff]
          %v975 = vld [vmem:[%s188 + $0x230] sm:$0xff]
          %v976 = vld [vmem:[%s188 + $0x260] sm:$0xff]
          %v977 = vld [vmem:[%s188 + $0x290] sm:$0xff]
          %v978 = vld [vmem:[%s188 + $0x2c0] sm:$0xff]
          %v979 = vld [vmem:[%s188 + $0x2f0] sm:$0xff]
          %v980 = vadd.s32 %v643, 512
          %vm981 = vcmp.lt.s32.totalorder %v980, %v644
          %v982 = vsel %vm981, 1, 0
          %vm983 = vcmp.eq.s32.totalorder %v982, 1
          %v984 = vsel %vm983, %v964, 0.0
          %v985 = vsel %vm983, %v965, 0.0
          %v986 = vsel %vm983, %v966, 0.0
          %v987 = vsel %vm983, %v967, 0.0
          %v988 = vsel %vm983, %v968, 0.0
          %v989 = vsel %vm983, %v969, 0.0
          %v990 = vsel %vm983, %v970, 0.0
          %v991 = vsel %vm983, %v971, 0.0
          %v992 = vsel %vm983, %v972, 0.0
          %v993 = vsel %vm983, %v973, 0.0
          %v994 = vsel %vm983, %v974, 0.0
          %v995 = vsel %vm983, %v975, 0.0
          %v996 = vsel %vm983, %v976, 0.0
          %v997 = vsel %vm983, %v977, 0.0
          %v998 = vsel %vm983, %v978, 0.0
          %v999 = vsel %vm983, %v979, 0.0
          %v1000 = vld [vmem:[#allocation2] sm:$0xff]
          %v1001 = vld [vmem:[#allocation2 + $0x8] sm:$0xff]
          %v1002 = vld [vmem:[#allocation2 + $0x10] sm:$0xff]
          %v1003 = vld [vmem:[#allocation2 + $0x18] sm:$0xff]
          %v1004 = vld [vmem:[#allocation2 + $0x20] sm:$0xff]
          %v1005 = vld [vmem:[#allocation2 + $0x28] sm:$0xff]
          %v1006 = vld [vmem:[#allocation2 + $0x30] sm:$0xff]
          %v1007 = vld [vmem:[#allocation2 + $0x38] sm:$0xff]
          %v1008 = vld [vmem:[#allocation2 + $0x40] sm:$0xff]
          %v1009 = vld [vmem:[#allocation2 + $0x48] sm:$0xff]
          %v1010 = vld [vmem:[#allocation2 + $0x50] sm:$0xff]
          %v1011 = vld [vmem:[#allocation2 + $0x58] sm:$0xff]
          %v1012 = vld [vmem:[#allocation2 + $0x60] sm:$0xff]
          %v1013 = vld [vmem:[#allocation2 + $0x68] sm:$0xff]
          %v1014 = vld [vmem:[#allocation2 + $0x70] sm:$0xff]
          %v1015 = vld [vmem:[#allocation2 + $0x78] sm:$0xff]
          %v1016 = vadd.f32 %v1000, %v984
          %v1017 = vadd.f32 %v1001, %v985
          %v1018 = vadd.f32 %v1002, %v986
          %v1019 = vadd.f32 %v1003, %v987
          %v1020 = vadd.f32 %v1004, %v988
          %v1021 = vadd.f32 %v1005, %v989
          %v1022 = vadd.f32 %v1006, %v990
          %v1023 = vadd.f32 %v1007, %v991
          %v1024 = vadd.f32 %v1008, %v992
          %v1025 = vadd.f32 %v1009, %v993
          %v1026 = vadd.f32 %v1010, %v994
          %v1027 = vadd.f32 %v1011, %v995
          %v1028 = vadd.f32 %v1012, %v996
          %v1029 = vadd.f32 %v1013, %v997
          %v1030 = vadd.f32 %v1014, %v998
          %v1031 = vadd.f32 %v1015, %v999
          %1032 = vst [vmem:[#allocation2] sm:$0xff] %v1016
          %1033 = vst [vmem:[#allocation2 + $0x8] sm:$0xff] %v1017
          %1034 = vst [vmem:[#allocation2 + $0x10] sm:$0xff] %v1018
          %1035 = vst [vmem:[#allocation2 + $0x18] sm:$0xff] %v1019
          %1036 = vst [vmem:[#allocation2 + $0x20] sm:$0xff] %v1020
          %1037 = vst [vmem:[#allocation2 + $0x28] sm:$0xff] %v1021
          %1038 = vst [vmem:[#allocation2 + $0x30] sm:$0xff] %v1022
          %1039 = vst [vmem:[#allocation2 + $0x38] sm:$0xff] %v1023
          %1040 = vst [vmem:[#allocation2 + $0x40] sm:$0xff] %v1024
          %1041 = vst [vmem:[#allocation2 + $0x48] sm:$0xff] %v1025
          %1042 = vst [vmem:[#allocation2 + $0x50] sm:$0xff] %v1026
          %1043 = vst [vmem:[#allocation2 + $0x58] sm:$0xff] %v1027
          %1044 = vst [vmem:[#allocation2 + $0x60] sm:$0xff] %v1028
          %1045 = vst [vmem:[#allocation2 + $0x68] sm:$0xff] %v1029
          %1046 = vst [vmem:[#allocation2 + $0x70] sm:$0xff] %v1030
          %1047 = vst [vmem:[#allocation2 + $0x78] sm:$0xff] %v1031
          %v1048 = vld [vmem:[%s188 + $0x28] sm:$0xff]
          %v1049 = vld [vmem:[%s188 + $0x58] sm:$0xff]
          %v1050 = vld [vmem:[%s188 + $0x88] sm:$0xff]
          %v1051 = vld [vmem:[%s188 + $0xb8] sm:$0xff]
          %v1052 = vld [vmem:[%s188 + $0xe8] sm:$0xff]
          %v1053 = vld [vmem:[%s188 + $0x118] sm:$0xff]
          %v1054 = vld [vmem:[%s188 + $0x148] sm:$0xff]
          %v1055 = vld [vmem:[%s188 + $0x178] sm:$0xff]
          %v1056 = vld [vmem:[%s188 + $0x1a8] sm:$0xff]
          %v1057 = vld [vmem:[%s188 + $0x1d8] sm:$0xff]
          %v1058 = vld [vmem:[%s188 + $0x208] sm:$0xff]
          %v1059 = vld [vmem:[%s188 + $0x238] sm:$0xff]
          %v1060 = vld [vmem:[%s188 + $0x268] sm:$0xff]
          %v1061 = vld [vmem:[%s188 + $0x298] sm:$0xff]
          %v1062 = vld [vmem:[%s188 + $0x2c8] sm:$0xff]
          %v1063 = vld [vmem:[%s188 + $0x2f8] sm:$0xff]
          %v1064 = vadd.s32 %v643, 640
          %vm1065 = vcmp.lt.s32.totalorder %v1064, %v644
          %v1066 = vsel %vm1065, 1, 0
          %vm1067 = vcmp.eq.s32.totalorder %v1066, 1
          %v1068 = vsel %vm1067, %v1048, 0.0
          %v1069 = vsel %vm1067, %v1049, 0.0
          %v1070 = vsel %vm1067, %v1050, 0.0
          %v1071 = vsel %vm1067, %v1051, 0.0
          %v1072 = vsel %vm1067, %v1052, 0.0
          %v1073 = vsel %vm1067, %v1053, 0.0
          %v1074 = vsel %vm1067, %v1054, 0.0
          %v1075 = vsel %vm1067, %v1055, 0.0
          %v1076 = vsel %vm1067, %v1056, 0.0
          %v1077 = vsel %vm1067, %v1057, 0.0
          %v1078 = vsel %vm1067, %v1058, 0.0
          %v1079 = vsel %vm1067, %v1059, 0.0
          %v1080 = vsel %vm1067, %v1060, 0.0
          %v1081 = vsel %vm1067, %v1061, 0.0
          %v1082 = vsel %vm1067, %v1062, 0.0
          %v1083 = vsel %vm1067, %v1063, 0.0
          %v1084 = vld [vmem:[#allocation2] sm:$0xff]
          %v1085 = vld [vmem:[#allocation2 + $0x8] sm:$0xff]
          %v1086 = vld [vmem:[#allocation2 + $0x10] sm:$0xff]
          %v1087 = vld [vmem:[#allocation2 + $0x18] sm:$0xff]
          %v1088 = vld [vmem:[#allocation2 + $0x20] sm:$0xff]
          %v1089 = vld [vmem:[#allocation2 + $0x28] sm:$0xff]
          %v1090 = vld [vmem:[#allocation2 + $0x30] sm:$0xff]
          %v1091 = vld [vmem:[#allocation2 + $0x38] sm:$0xff]
          %v1092 = vld [vmem:[#allocation2 + $0x40] sm:$0xff]
          %v1093 = vld [vmem:[#allocation2 + $0x48] sm:$0xff]
          %v1094 = vld [vmem:[#allocation2 + $0x50] sm:$0xff]
          %v1095 = vld [vmem:[#allocation2 + $0x58] sm:$0xff]
          %v1096 = vld [vmem:[#allocation2 + $0x60] sm:$0xff]
          %v1097 = vld [vmem:[#allocation2 + $0x68] sm:$0xff]
          %v1098 = vld [vmem:[#allocation2 + $0x70] sm:$0xff]
          %v1099 = vld [vmem:[#allocation2 + $0x78] sm:$0xff]
          %v1100 = vadd.f32 %v1084, %v1068
          %v1101 = vadd.f32 %v1085, %v1069
          %v1102 = vadd.f32 %v1086, %v1070
          %v1103 = vadd.f32 %v1087, %v1071
          %v1104 = vadd.f32 %v1088, %v1072
          %v1105 = vadd.f32 %v1089, %v1073
          %v1106 = vadd.f32 %v1090, %v1074
          %v1107 = vadd.f32 %v1091, %v1075
          %v1108 = vadd.f32 %v1092, %v1076
          %v1109 = vadd.f32 %v1093, %v1077
          %v1110 = vadd.f32 %v1094, %v1078
          %v1111 = vadd.f32 %v1095, %v1079
          %v1112 = vadd.f32 %v1096, %v1080
          %v1113 = vadd.f32 %v1097, %v1081
          %v1114 = vadd.f32 %v1098, %v1082
          %v1115 = vadd.f32 %v1099, %v1083
          %1116 = vst [vmem:[#allocation2] sm:$0xff] %v1100
          %1117 = vst [vmem:[#allocation2 + $0x8] sm:$0xff] %v1101
          %1118 = vst [vmem:[#allocation2 + $0x10] sm:$0xff] %v1102
          %1119 = vst [vmem:[#allocation2 + $0x18] sm:$0xff] %v1103
          %1120 = vst [vmem:[#allocation2 + $0x20] sm:$0xff] %v1104
          %1121 = vst [vmem:[#allocation2 + $0x28] sm:$0xff] %v1105
          %1122 = vst [vmem:[#allocation2 + $0x30] sm:$0xff] %v1106
          %1123 = vst [vmem:[#allocation2 + $0x38] sm:$0xff] %v1107
          %1124 = vst [vmem:[#allocation2 + $0x40] sm:$0xff] %v1108
          %1125 = vst [vmem:[#allocation2 + $0x48] sm:$0xff] %v1109
          %1126 = vst [vmem:[#allocation2 + $0x50] sm:$0xff] %v1110
          %1127 = vst [vmem:[#allocation2 + $0x58] sm:$0xff] %v1111
          %1128 = vst [vmem:[#allocation2 + $0x60] sm:$0xff] %v1112
          %1129 = vst [vmem:[#allocation2 + $0x68] sm:$0xff] %v1113
          %1130 = vst [vmem:[#allocation2 + $0x70] sm:$0xff] %v1114
          %1131 = vst [vmem:[#allocation2 + $0x78] sm:$0xff] %v1115
          %v1132 = vld [vmem:[#allocation2] sm:$0xff]
          %v1133 = vld [vmem:[#allocation2 + $0x8] sm:$0xff]
          %v1134 = vld [vmem:[#allocation2 + $0x10] sm:$0xff]
          %v1135 = vld [vmem:[#allocation2 + $0x18] sm:$0xff]
          %v1136 = vld [vmem:[#allocation2 + $0x20] sm:$0xff]
          %v1137 = vld [vmem:[#allocation2 + $0x28] sm:$0xff]
          %v1138 = vld [vmem:[#allocation2 + $0x30] sm:$0xff]
          %v1139 = vld [vmem:[#allocation2 + $0x38] sm:$0xff]
          %v1140 = vld [vmem:[#allocation2 + $0x40] sm:$0xff]
          %v1141 = vld [vmem:[#allocation2 + $0x48] sm:$0xff]
          %v1142 = vld [vmem:[#allocation2 + $0x50] sm:$0xff]
          %v1143 = vld [vmem:[#allocation2 + $0x58] sm:$0xff]
          %v1144 = vld [vmem:[#allocation2 + $0x60] sm:$0xff]
          %v1145 = vld [vmem:[#allocation2 + $0x68] sm:$0xff]
          %v1146 = vld [vmem:[#allocation2 + $0x70] sm:$0xff]
          %v1147 = vld [vmem:[#allocation2 + $0x78] sm:$0xff]
          %1148 = vadd.xlane.f32.xlu0 %v1132
          %v1149 = vpop.xlane.xlu0 %1148
          %1150 = vadd.xlane.f32.xlu0 %v1133
          %v1151 = vpop.xlane.xlu0 %1150
          %1152 = vadd.xlane.f32.xlu0 %v1134
          %v1153 = vpop.xlane.xlu0 %1152
          %1154 = vadd.xlane.f32.xlu0 %v1135
          %v1155 = vpop.xlane.xlu0 %1154
          %1156 = vadd.xlane.f32.xlu0 %v1136
          %v1157 = vpop.xlane.xlu0 %1156
          %1158 = vadd.xlane.f32.xlu0 %v1137
          %v1159 = vpop.xlane.xlu0 %1158
          %1160 = vadd.xlane.f32.xlu0 %v1138
          %v1161 = vpop.xlane.xlu0 %1160
          %1162 = vadd.xlane.f32.xlu0 %v1139
          %v1163 = vpop.xlane.xlu0 %1162
          %1164 = vadd.xlane.f32.xlu0 %v1140
          %v1165 = vpop.xlane.xlu0 %1164
          %1166 = vadd.xlane.f32.xlu0 %v1141
          %v1167 = vpop.xlane.xlu0 %1166
          %1168 = vadd.xlane.f32.xlu0 %v1142
          %v1169 = vpop.xlane.xlu0 %1168
          %1170 = vadd.xlane.f32.xlu0 %v1143
          %v1171 = vpop.xlane.xlu0 %1170
          %1172 = vadd.xlane.f32.xlu0 %v1144
          %v1173 = vpop.xlane.xlu0 %1172
          %1174 = vadd.xlane.f32.xlu0 %v1145
          %v1175 = vpop.xlane.xlu0 %1174
          %1176 = vadd.xlane.f32.xlu0 %v1146
          %v1177 = vpop.xlane.xlu0 %1176
          %1178 = vadd.xlane.f32.xlu0 %v1147
          %v1179 = vpop.xlane.xlu0 %1178
          %v1180 = vmul.f32 %v1149, 0.0012755102
          %v1181 = vmul.f32 %v1151, 0.0012755102
          %v1182 = vmul.f32 %v1153, 0.0012755102
          %v1183 = vmul.f32 %v1155, 0.0012755102
          %v1184 = vmul.f32 %v1157, 0.0012755102
          %v1185 = vmul.f32 %v1159, 0.0012755102
          %v1186 = vmul.f32 %v1161, 0.0012755102
          %v1187 = vmul.f32 %v1163, 0.0012755102
          %v1188 = vmul.f32 %v1165, 0.0012755102
          %v1189 = vmul.f32 %v1167, 0.0012755102
          %v1190 = vmul.f32 %v1169, 0.0012755102
          %v1191 = vmul.f32 %v1171, 0.0012755102
          %v1192 = vmul.f32 %v1173, 0.0012755102
          %v1193 = vmul.f32 %v1175, 0.0012755102
          %v1194 = vmul.f32 %v1177, 0.0012755102
          %v1195 = vmul.f32 %v1179, 0.0012755102
          %v1196 = vld [vmem:[%s1] sm:$0xff]
          %v1197 = vld [vmem:[%s1 + $0x8] sm:$0xff]
          %v1198 = vld [vmem:[%s1 + $0x10] sm:$0xff]
          %v1199 = vld [vmem:[%s1 + $0x18] sm:$0xff]
          %v1200 = vld [vmem:[%s1 + $0x20] sm:$0xff]
          %v1201 = vld [vmem:[%s1 + $0x28] sm:$0xff]
          %v1202 = vld [vmem:[%s1 + $0x30] sm:$0xff]
          %v1203 = vld [vmem:[%s1 + $0x38] sm:$0xff]
          %v1204 = vld [vmem:[%s2] sm:$0x1]
          %v1206 = vlaneseq
          %v1207 = vshrl.u32 %v1206, 7
          %v1208 = vsub.s32 0, %v1207
          %v1209 = vrot.slane %v1204, %v1208
          %v1227 = vlaneseq
          %v1228 = vshrl.u32 %v1227, 7
          %v1229 = vsub.s32 %v643, %v1228
          %v1230 = vrot.slane %v1180, %v1229
          %v1231 = vadd.s32 %v643, 4294967288
          %v1232 = vlaneseq
          %v1233 = vshrl.u32 %v1232, 7
          %v1234 = vsub.s32 %v1231, %v1233
          %v1235 = vrot.slane %v1181, %v1234
          %vm1236 = vcmask 130112
          %v1237 = vsel %vm1236, %v1235, %v1230
          %v1238 = vadd.s32 %v643, 4294967280
          %v1239 = vlaneseq
          %v1240 = vshrl.u32 %v1239, 7
          %v1241 = vsub.s32 %v1238, %v1240
          %v1242 = vrot.slane %v1182, %v1241
          %vm1243 = vcmask 195712
          %v1244 = vsel %vm1243, %v1242, %v1237
          %v1245 = vadd.s32 %v643, 4294967272
          %v1246 = vlaneseq
          %v1247 = vshrl.u32 %v1246, 7
          %v1248 = vsub.s32 %v1245, %v1247
          %v1249 = vrot.slane %v1183, %v1248
          %vm1250 = vcmask 261312
          %v1251 = vsel %vm1250, %v1249, %v1244
          %v1252 = vadd.s32 %v643, 4294967264
          %v1253 = vlaneseq
          %v1254 = vshrl.u32 %v1253, 7
          %v1255 = vsub.s32 %v1252, %v1254
          %v1256 = vrot.slane %v1184, %v1255
          %vm1257 = vcmask 326912
          %v1258 = vsel %vm1257, %v1256, %v1251
          %v1259 = vadd.s32 %v643, 4294967256
          %v1260 = vlaneseq
          %v1261 = vshrl.u32 %v1260, 7
          %v1262 = vsub.s32 %v1259, %v1261
          %v1263 = vrot.slane %v1185, %v1262
          %vm1264 = vcmask 392512
          %v1265 = vsel %vm1264, %v1263, %v1258
          %v1266 = vadd.s32 %v643, 4294967248
          %v1267 = vlaneseq
          %v1268 = vshrl.u32 %v1267, 7
          %v1269 = vsub.s32 %v1266, %v1268
          %v1270 = vrot.slane %v1186, %v1269
          %vm1271 = vcmask 458112
          %v1272 = vsel %vm1271, %v1270, %v1265
          %v1273 = vadd.s32 %v643, 4294967240
          %v1274 = vlaneseq
          %v1275 = vshrl.u32 %v1274, 7
          %v1276 = vsub.s32 %v1273, %v1275
          %v1277 = vrot.slane %v1187, %v1276
          %vm1278 = vcmask 523712
          %v1279 = vsel %vm1278, %v1277, %v1272
          %v1280 = vlaneseq
          %v1281 = vshrl.u32 %v1280, 7
          %v1282 = vsub.s32 %v643, %v1281
          %v1283 = vrot.slane %v1188, %v1282
          %v1284 = vlaneseq
          %v1285 = vshrl.u32 %v1284, 7
          %v1286 = vsub.s32 %v1231, %v1285
          %v1287 = vrot.slane %v1189, %v1286
          %v1288 = vsel %vm1236, %v1287, %v1283
          %v1289 = vlaneseq
          %v1290 = vshrl.u32 %v1289, 7
          %v1291 = vsub.s32 %v1238, %v1290
          %v1292 = vrot.slane %v1190, %v1291
          %v1293 = vsel %vm1243, %v1292, %v1288
          %v1294 = vlaneseq
          %v1295 = vshrl.u32 %v1294, 7
          %v1296 = vsub.s32 %v1245, %v1295
          %v1297 = vrot.slane %v1191, %v1296
          %v1298 = vsel %vm1250, %v1297, %v1293
          %v1299 = vlaneseq
          %v1300 = vshrl.u32 %v1299, 7
          %v1301 = vsub.s32 %v1252, %v1300
          %v1302 = vrot.slane %v1192, %v1301
          %v1303 = vsel %vm1257, %v1302, %v1298
          %v1304 = vlaneseq
          %v1305 = vshrl.u32 %v1304, 7
          %v1306 = vsub.s32 %v1259, %v1305
          %v1307 = vrot.slane %v1193, %v1306
          %v1308 = vsel %vm1264, %v1307, %v1303
          %v1309 = vlaneseq
          %v1310 = vshrl.u32 %v1309, 7
          %v1311 = vsub.s32 %v1266, %v1310
          %v1312 = vrot.slane %v1194, %v1311
          %v1313 = vsel %vm1271, %v1312, %v1308
          %v1314 = vlaneseq
          %v1315 = vshrl.u32 %v1314, 7
          %v1316 = vsub.s32 %v1273, %v1315
          %v1317 = vrot.slane %v1195, %v1316
          %v1318 = vsel %vm1278, %v1317, %v1313
          %vm1319 = vcmask 1041409
          %v1320 = vsel %vm1319, %v1318, %v1279
          %vm1321 = vcmask 523264
          %v1322 = vsel %vm1321, %v1320, 0
          %1324 = vmatprep.subr.mxu0 0.0
          %1325 = vmatpush1.msra.mxu0 0.0
          %1326 = vmatprep.subr.mxu0 0.0
          %1327 = vmatpush1.msra.mxu0 0.0
          %1328 = vmatprep.subr.mxu0 0.0
          %1329 = vmatpush1.msra.mxu0 0.0
          %1330 = vmatprep.subr.mxu0 0.0
          %1331 = vmatpush1.msra.mxu0 0.0
          %1332 = vmatprep.subr.mxu0 0.0
          %1333 = vmatpush1.msra.mxu0 0.0
          %1334 = vmatprep.subr.mxu0 0.0
          %1335 = vmatpush1.msra.mxu0 0.0
          %1336 = vmatprep.subr.mxu0 0.0
          %1337 = vmatpush1.msra.mxu0 0.0
          %1338 = vmatprep.subr.mxu0 0.0
          %1339 = vmatpush1.msra.mxu0 0.0
          %1340 = vmatprep.subr.mxu0 0.0
          %1341 = vmatpush1.msra.mxu0 %v1203
          %1342 = vmatprep.subr.mxu0 0.0
          %1343 = vmatpush1.msra.mxu0 %v1202
          %1344 = vmatprep.subr.mxu0 0.0
          %1345 = vmatpush1.msra.mxu0 %v1201
          %1346 = vmatprep.subr.mxu0 0.0
          %1347 = vmatpush1.msra.mxu0 %v1200
          %1348 = vmatprep.subr.mxu0 0.0
          %1349 = vmatpush1.msra.mxu0 %v1199
          %1350 = vmatprep.subr.mxu0 0.0
          %1351 = vmatpush1.msra.mxu0 %v1198
          %1352 = vmatprep.subr.mxu0 0.0
          %1353 = vmatpush1.msra.mxu0 %v1197
          %1354 = vmatprep.subr.mxu0 0.0
          %1355 = vmatpush1.msra.mxu0 %v1196
          %1356 = vmatprep.subr.mxu0 0.0
          %1357 = vmatpush2.msra.mxu0 0.0
          %1358 = vmatprep.subr.mxu0 0.0
          %1359 = vmatpush2.msra.mxu0 0.0
          %1360 = vmatprep.subr.mxu0 0.0
          %1361 = vmatpush2.msra.mxu0 0.0
          %1362 = vmatprep.subr.mxu0 0.0
          %1363 = vmatpush2.msra.mxu0 0.0
          %1364 = vmatprep.subr.mxu0 0.0
          %1365 = vmatpush2.msra.mxu0 0.0
          %1366 = vmatprep.subr.mxu0 0.0
          %1367 = vmatpush2.msra.mxu0 0.0
          %1368 = vmatprep.subr.mxu0 0.0
          %1369 = vmatpush2.msra.mxu0 0.0
          %1370 = vmatprep.subr.mxu0 0.0
          %1371 = vmatpush2.msra.mxu0 0.0
          %1372 = vmatprep.subr.mxu0 0.0
          %1373 = vmatpush2.msra.mxu0 0.0
          %1374 = vmatprep.subr.mxu0 0.0
          %1375 = vmatpush2.msra.mxu0 0.0
          %1376 = vmatprep.subr.mxu0 0.0
          %1377 = vmatpush2.msra.mxu0 0.0
          %1378 = vmatprep.subr.mxu0 0.0
          %1379 = vmatpush2.msra.mxu0 0.0
          %1380 = vmatprep.subr.mxu0 0.0
          %1381 = vmatpush2.msra.mxu0 0.0
          %1382 = vmatprep.subr.mxu0 0.0
          %1383 = vmatpush2.msra.mxu0 0.0
          %1384 = vmatprep.subr.mxu0 0.0
          %1385 = vmatpush2.msra.mxu0 0.0
          %1386 = vmatprep.subr.mxu0 0.0
          %1387 = vmatpush2.msra.mxu0 0.0
          %1388 = vmatprep.mubr.f32.mxu0 0.0
          %1389 = vmatmul.mubr.f32.gmra.mxu0 %v1322
          %v1390 = vpop.f32.mrf.mxu0
          %v1391 = vadd.f32 %v1209, %v1390
          %v1392 = vpop.f32.mrf.mxu0
          %1393 = vdwg.mxu0
          %vm1394 = vcmask 123904
          %1395 = vst.msk [vmem:[#allocation6] sm:$0x3] %vm1394, %v1391
        $region48: #{tpu_custom_call.1} parent=31 // pred_fallthru
          _
        // Predicated region
        $region49: #{tpu_custom_call.1} parent=31 // pred_check
          %p1396 = pneg %p118
        $region50: #{tpu_custom_call.1} parent=31 // pred_check_branch
          %1398 = sbr.rel (%p1396) target = $region52
        $region51: #{tpu_custom_call.1} parent=31 // pred_region
          %s1400 = ssub.s32 32, 32
          %1401 = vsyncadd [#allocation5], %s1400
          %s1402 = smul.addr %s22, 32
          %s1403 = scalar_lea.hbm %s3, %s1402
          %s1405 = sshll.u32 [#allocation6], 4
          %s1406 = int_to_ptr.vmem [resolvable:$true] %s1405
          %1408 = dma.vmem_to_hbm [thread:$0]  %s1406, 32, %s1403, [#allocation5]
        $region52: #{tpu_custom_call.1} parent=31 // pred_fallthru
          _
        // Predicated region
        $region53: #{tpu_custom_call.1} parent=31 // pred_check
          %p1409 = pneg %p118
        $region54: #{tpu_custom_call.1} parent=31 // pred_check_branch
          %1411 = sbr.rel (%p1409) target = $region56
        $region55: #{tpu_custom_call.1} parent=31 // pred_region
          %1412 = dma.done [#allocation5], 32
        $region56: #{tpu_custom_call.1} parent=31 // pred_fallthru
          _
      $region32: #{tpu_custom_call.1} parent=5 // pred_fallthru
        _
      %p1413 = scmp.le.s32.totalorder 2, %s13
      // Predicated region
      $region57: #{tpu_custom_call.1} parent=5 // pred_check
        %p1414 = pneg %p1413
      $region58: #{tpu_custom_call.1} parent=5 // pred_check_branch
        %1416 = sbr.rel (%p1414) target = $region60
      $region59: #{tpu_custom_call.1} parent=5 // pred_region
        %s1417 = ssub.s32 %s13, 2
      $region60: #{tpu_custom_call.1} parent=5 // pred_fallthru
        _
    $region6: #{tpu_custom_call.1} parent=1 // loop_footer
      %s17 = sadd.s32 1, %s13
    $region7: #{tpu_custom_call.1} parent=1 // loop_footer_branch
      %12 = sbr.rel target = $region3
    $region8: #{tpu_custom_call.1} parent=1 // loop_exit
      _
    %1418 = vsyncpa [#allocation4], 1
    %s1419 = scalar_lea.sflag [#allocation4], 1
    %1420 = vsyncpa %s1419, 1
    %1421 = vsyncpa [#allocation5], 1
    %s1422 = scalar_lea.sflag [#allocation5], 1
    %1423 = vsyncpa %s1422, 1

</llo_original>
